<compile_context>
chip_gen: v7x
topology: tpu7x:2x2x1
jax: 0.10.0
libtpu: 0.0.40
codegen_flags: <defaults>
</compile_context>

<pallas_src>
import functools

import jax
import jax.numpy as jnp
from jax.experimental import pallas as pl
from jax.experimental.pallas import tpu as pltpu


def _cva_kernel(f1_ref, f2_ref, w_ref, b_ref, out_ref,
                q_scr, kv_scr, x1n_scr,
                *, num_heads, seq_len, batch_block, row_chunk, approx_recip):
    c = f1_ref.shape[-1]
    t = seq_len
    bb = batch_block
    dh = c // num_heads
    scale = 1.0 / float(dh) ** 0.5
    eps = 1e-5
    rows = bb * t

    # ---- Phase 1: LayerNorm + fused projections over the (BB*T, C) slab,
    # processed in row chunks so only one chunk of f32 temporaries is live.
    def project_chunk(r0, nrows):
        def layer_norm(x):          # f32 elementwise (v5e has no bf16 VPU/EUP)
            mu = jnp.mean(x, axis=-1, keepdims=True)
            xc = x - mu
            var = jnp.mean(xc * xc, axis=-1, keepdims=True)
            return xc * jax.lax.rsqrt(var + eps)

        x1n = layer_norm(f1_ref[pl.ds(r0, nrows), :])        # (nrows, C) f32
        x2n = layer_norm(f2_ref[pl.ds(r0, nrows), :])
        # bf16 operands, f32 accumulation; K and V fused into one wide matmul.
        q = jnp.dot(x1n.astype(jnp.bfloat16), w_ref[:, 0:c],
                    preferred_element_type=jnp.float32) + b_ref[:, 0:c]
        kv = jnp.dot(x2n.astype(jnp.bfloat16), w_ref[:, c:3 * c],
                     preferred_element_type=jnp.float32) + b_ref[:, c:3 * c]
        # Fold the 1/sqrt(dh) score scale into Q before the bf16 store.
        q_scr[pl.ds(r0, nrows), :] = (q * scale).astype(jnp.bfloat16)
        kv_scr[pl.ds(r0, nrows), :] = kv.astype(jnp.bfloat16)
        x1n_scr[pl.ds(r0, nrows), :] = x1n                   # residual stays f32

    n_chunks = rows // row_chunk
    if n_chunks == 1:
        project_chunk(0, rows)
    else:
        def chunk_body(ci, carry):
            project_chunk(pl.multiple_of(ci * row_chunk, row_chunk), row_chunk)
            return carry
        jax.lax.fori_loop(0, n_chunks, chunk_body, 0)

    # ---- Phase 2: attention for each batch element of the block.
    def attend(j):
        r0 = j * t
        if not isinstance(j, int):                            # dynamic index hint
            r0 = pl.multiple_of(r0, t)
        q_b = q_scr[pl.ds(r0, t), :]                          # (T, C) bf16, pre-scaled
        k_b = kv_scr[pl.ds(r0, t), 0:c]                       # (T, C) bf16
        v_b = kv_scr[pl.ds(r0, t), c:2 * c]                   # (T, C) bf16

        heads = []
        for h in range(num_heads):                            # static unroll (4)
            lo = h * dh
            q_h = q_b[:, lo:lo + dh]
            k_h = k_b[:, lo:lo + dh]
            v_h = v_b[:, lo:lo + dh]
            # scores = Q_h @ K_h^T via contraction on last dims (no explicit .T)
            s = jax.lax.dot_general(q_h, k_h, (((1,), (1,)), ((), ())),
                                    preferred_element_type=jnp.float32)
            s = s - jnp.max(s, axis=-1, keepdims=True)
            p = jnp.exp(s)
            denom = jnp.sum(p, axis=-1, keepdims=True)
            if approx_recip:
                p = p * pl.reciprocal(denom, approx=True)     # EUP slot, ~free
            else:
                p = p / denom
            heads.append(jnp.dot(p.astype(jnp.bfloat16), v_h,
                                 preferred_element_type=jnp.float32))

        # Lane-concat the heads; ONE full-K output-projection matmul.
        o_cat = jnp.concatenate(heads, axis=-1).astype(jnp.bfloat16)   # (T, C)
        o = jnp.dot(o_cat, w_ref[:, 3 * c:4 * c],
                    preferred_element_type=jnp.float32)
        o = o + b_ref[:, 3 * c:4 * c] + x1n_scr[pl.ds(r0, t), :]       # residual
        # Store into the resident (T, BB, C) output block at batch slot j;
        # the whole block is written back to HBM once per grid step.
        out_ref[:, pl.ds(j, 1), :] = o[:, None, :].astype(out_ref.dtype)

    if bb <= 8:
        for j in range(bb):          # small block: static slices everywhere
            attend(j)
    else:
        def batch_body(j, carry):
            attend(j)
            return carry
        jax.lax.fori_loop(0, bb, batch_body, 0)


def _block_spec(shape, index_map, *, buffered=None):
    """BlockSpec with an optional buffer-count override (falls back to default
    pipelining on jax versions without `pipeline_mode`)."""
    if buffered is not None:
        try:
            return pl.BlockSpec(shape, index_map,
                                pipeline_mode=pl.Buffered(buffered))
        except Exception:
            pass
    return pl.BlockSpec(shape, index_map)


def _pick_row_chunk(rows, max_rows=512):
    """Largest divisor of `rows` that is a multiple of 8 and <= max_rows."""
    if rows <= max_rows:
        return rows
    for d in range(max_rows - max_rows % 8, 7, -8):
        if rows % d == 0:
            return d
    return rows


def _pick_batch_block(b, t, c, vmem_cap):
    """Largest batch block whose VMEM footprint fits a conservative budget,
    preferring >= 2 blocks so v7x's two TensorCores both get grid work."""
    budget = int(vmem_cap * 0.55) - 8 * c * c - (4 << 20)
    per_be = 34 * t * c              # slabs + scratch + output, per batch element
    max_bb = max(1, budget // per_be) if budget > 0 else 1
    # Valid batch blocks: divide B and keep the (BB, C) output tile legal
    # (BB == B or BB a multiple of 8).
    candidates = [d for d in range(1, b + 1)
                  if b % d == 0 and (d == b or d % 8 == 0)]
    feasible = [d for d in candidates if d <= max_bb] or [candidates[0]]
    bb = max(feasible)
    smaller = [d for d in feasible if d < b]
    if bb == b and smaller:
        bb = max(smaller)            # keep >= 2 grid steps when possible (v7x)
    return bb


def cva_forward(feature1, feature2, params, *, num_heads=4, batch_block=None,
                approx_recip=True):
    """feature1/feature2: (B, T, C) float32.  Returns (T, B, C) (PyTorch layout)."""
    b, t, c = feature1.shape
    assert c % num_heads == 0, "C must be divisible by num_heads"
    dh = c // num_heads
    # Shape requirements for clean lane/sublane layouts (lowering + perf).
    assert c % 128 == 0, "C must be a multiple of 128 (lane alignment)"
    assert dh % 16 == 0, "head_dim must be a multiple of 16 (bf16 sublane packing)"
    assert t % 8 == 0, "T must be a multiple of 8 (sublane alignment)"

    wq, wk, wv, wo, bq, bk, bv, bo = params

    try:
        vmem_cap = int(pltpu.get_tpu_info().vmem_capacity_bytes)
    except Exception:
        vmem_cap = 64 << 20          # conservative fallback (v7x per-TC VMEM)

    if batch_block is None:
        batch_block = _pick_batch_block(b, t, c, vmem_cap)
    assert b % batch_block == 0
    assert batch_block == b or batch_block % 8 == 0, (
        "batch_block must equal B or be a multiple of 8 (output block tiling)")
    nb = b // batch_block
    rows = batch_block * t
    row_chunk = _pick_row_chunk(rows)

    # Pack the four projection weights into one bf16 operand and the biases
    # into one f32 operand (single in_spec each; halves weight VMEM).
    w_packed = jnp.concatenate([wq, wk, wv, wo], axis=1).astype(jnp.bfloat16)
    b_packed = jnp.concatenate([bq, bk, bv, bo], axis=1).astype(jnp.float32)

    f1_2d = feature1.reshape(b * t, c)
    f2_2d = feature2.reshape(b * t, c)

    # VMEM estimate: input slabs (+double buffer when nb>1), packed weights,
    # bf16/f32 scratch, resident output block, phase-1 f32 temporaries.
    in_bufs = 1 if nb == 1 else 2
    est = (2 * rows * c * 4 * in_bufs          # f1 / f2 slabs
           + 8 * c * c + 16 * c                # packed weights (bf16) + biases
           + 10 * rows * c                     # q(bf16) + kv(bf16) + x1n(f32)
           + 2 * t * batch_block * c * 4       # output block (double buffered)
           + 20 * row_chunk * c)               # phase-1 live f32 temporaries
    vmem_limit = int(min(vmem_cap, max(est * 1.4 + (2 << 20), 32 << 20)))

    kernel = functools.partial(_cva_kernel, num_heads=num_heads, seq_len=t,
                               batch_block=batch_block, row_chunk=row_chunk,
                               approx_recip=approx_recip)

    in_specs = [
        # Input slabs: single-buffer when the grid has only one step.
        _block_spec((rows, c), lambda i: (i, 0),
                    buffered=1 if nb == 1 else None),
        _block_spec((rows, c), lambda i: (i, 0),
                    buffered=1 if nb == 1 else None),
        # Constant operands -> single-buffered (their block never changes).
        _block_spec((c, 4 * c), lambda i: (0, 0), buffered=1),   # [Wq|Wk|Wv|Wo]
        _block_spec((1, 4 * c), lambda i: (0, 0), buffered=1),   # [bq|bk|bv|bo]
    ]

    return pl.pallas_call(
        kernel,
        out_shape=jax.ShapeDtypeStruct((t, b, c), jnp.float32),
        grid_spec=pltpu.PrefetchScalarGridSpec(
            num_scalar_prefetch=0,
            grid=(nb,),
            in_specs=in_specs,
            # Output stays in the (T, B, C) PyTorch layout; one resident
            # (T, BB, C) block per grid step, written back in a single pass.
            out_specs=pl.BlockSpec((t, batch_block, c), lambda i: (0, i, 0)),
            scratch_shapes=[
                pltpu.VMEM((rows, c), jnp.bfloat16),       # Q (pre-scaled)
                pltpu.VMEM((rows, 2 * c), jnp.bfloat16),   # K | V
                pltpu.VMEM((rows, c), jnp.float32),        # LN(f1) residual
            ],
        ),
        compiler_params=pltpu.CompilerParams(
            dimension_semantics=("parallel",),
            vmem_limit_bytes=vmem_limit),
    )(f1_2d, f2_2d, w_packed, b_packed)


def make_params(key, c):
    """Deterministic synthetic MultiheadAttention parameters.

    in_proj_weight (3C, C) split into Wq/Wk/Wv; out_proj (C, C).  Weights are
    returned PRE-TRANSPOSED so the math is y = x @ W + b.
    """
    ks = jax.random.split(key, 8)
    lim = 1.0 / jnp.sqrt(c)
    u = lambda k, shape: jax.random.uniform(k, shape, jnp.float32, -lim, lim)
    wq = u(ks[0], (c, c)).T
    wk = u(ks[1], (c, c)).T
    wv = u(ks[2], (c, c)).T
    wo = u(ks[3], (c, c)).T
    bq = u(ks[4], (1, c))
    bk = u(ks[5], (1, c))
    bv = u(ks[6], (1, c))
    bo = u(ks[7], (1, c))
    return (wq, wk, wv, wo, bq, bk, bv, bo)


def cva_reference(feature1, feature2, params, *, num_heads=4):
    """Pure-JAX f32 reference mirroring torch.nn.MultiheadAttention (eval)."""
    wq, wk, wv, wo, bq, bk, bv, bo = params
    eps = 1e-5

    def ln(x):
        mu = jnp.mean(x, -1, keepdims=True)
        var = jnp.mean((x - mu) ** 2, -1, keepdims=True)
        return (x - mu) / jnp.sqrt(var + eps)

    x1 = ln(feature1)
    x2 = ln(feature2)
    q = x1 @ wq + bq
    k = x2 @ wk + bk
    v = x2 @ wv + bv
    b, t, c = q.shape
    dh = c // num_heads
    qh = q.reshape(b, t, num_heads, dh).transpose(0, 2, 1, 3)
    kh = k.reshape(b, t, num_heads, dh).transpose(0, 2, 1, 3)
    vh = v.reshape(b, t, num_heads, dh).transpose(0, 2, 1, 3)
    s = jnp.einsum("bhqd,bhkd->bhqk", qh, kh) / jnp.sqrt(dh)
    p = jax.nn.softmax(s, axis=-1)
    o = jnp.einsum("bhqk,bhkd->bhqd", p, vh)
    o = o.transpose(0, 2, 1, 3).reshape(b, t, c)
    o = o @ wo + bo
    out = o + x1
    return jnp.transpose(out, (1, 0, 2))  # (T, B, C)


if __name__ == "__main__":
    B, T, C, H = 2, 8, 128, 4  # small shapes; C divisible by num_heads=4

    key = jax.random.PRNGKey(0)
    k1, k2, kp = jax.random.split(key, 3)
    feature1 = jax.random.normal(k1, (B, T, C), jnp.float32)
    feature2 = jax.random.normal(k2, (B, T, C), jnp.float32)
    params = make_params(kp, C)

    out = cva_forward(feature1, feature2, params, num_heads=H)
    out = jax.block_until_ready(out)

    ref = cva_reference(feature1, feature2, params, num_heads=H)
    assert out.shape == (T, B, C)
    # bf16 matmul operands (f32 accumulation) + approx softmax reciprocal:
    # compare against the f32 reference at a bf16-appropriate tolerance.
    assert jnp.allclose(out, ref, atol=2e-2, rtol=2e-2), "mismatch vs reference"

    print("KERNEL_OK")
</pallas_src>

<mosaic_0001>
module attributes {stable_mosaic.version = 11 : i64} {
  func.func @_cva_kernel(%arg0: i32, %arg1: memref<16x128xf32, #tpu.memory_space<vmem>>, %arg2: memref<16x128xf32, #tpu.memory_space<vmem>>, %arg3: memref<128x512xbf16, #tpu.memory_space<vmem>>, %arg4: memref<1x512xf32, #tpu.memory_space<vmem>>, %arg5: memref<8x2x128xf32, #tpu.memory_space<vmem>>, %arg6: memref<16x128xbf16, #tpu.memory_space<vmem>>, %arg7: memref<16x256xbf16, #tpu.memory_space<vmem>>, %arg8: memref<16x128xf32, #tpu.memory_space<vmem>>) attributes {dimension_semantics = [#tpu.dimension_semantics<parallel>], iteration_bounds = array<i64: 1>, scalar_prefetch = 0 : i64, scratch_operands = 3 : i64, tpu.core_type = #tpu.core_type<tc>, window_params = [{pipeline_mode = #tpu.pipeline_mode<synchronous>, transform_indices = @transform_0, window_bounds = array<i64: 16, 128>}, {pipeline_mode = #tpu.pipeline_mode<synchronous>, transform_indices = @transform_1, window_bounds = array<i64: 16, 128>}, {pipeline_mode = #tpu.pipeline_mode<synchronous>, transform_indices = @transform_2, window_bounds = array<i64: 128, 512>}, {pipeline_mode = #tpu.pipeline_mode<synchronous>, transform_indices = @transform_3, window_bounds = array<i64: 1, 512>}, {transform_indices = @transform_4, window_bounds = array<i64: 8, 2, 128>}]} {
    %c0 = arith.constant 0 : index
    %c0_0 = arith.constant 0 : index
    %0 = vector.load %arg1[%c0, %c0_0] : memref<16x128xf32, #tpu.memory_space<vmem>>, vector<16x128xf32>
    %cst = arith.constant dense<0.000000e+00> : vector<16xf32>
    %1 = vector.multi_reduction <add>, %0, %cst [1] : vector<16x128xf32> to vector<16xf32>
    %2 = vector.shape_cast %1 : vector<16xf32> to vector<16x1xf32>
    %cst_1 = arith.constant 1.280000e+02 : f32
    %3 = vector.broadcast %cst_1 : f32 to vector<16x1xf32>
    %4 = arith.divf %2, %3 : vector<16x1xf32>
    %5 = vector.broadcast %4 : vector<16x1xf32> to vector<16x128xf32>
    %6 = arith.subf %0, %5 : vector<16x128xf32>
    %7 = arith.mulf %6, %6 : vector<16x128xf32>
    %cst_2 = arith.constant dense<0.000000e+00> : vector<16xf32>
    %8 = vector.multi_reduction <add>, %7, %cst_2 [1] : vector<16x128xf32> to vector<16xf32>
    %9 = vector.shape_cast %8 : vector<16xf32> to vector<16x1xf32>
    %cst_3 = arith.constant 1.280000e+02 : f32
    %10 = vector.broadcast %cst_3 : f32 to vector<16x1xf32>
    %11 = arith.divf %9, %10 : vector<16x1xf32>
    %cst_4 = arith.constant 9.99999974E-6 : f32
    %12 = vector.broadcast %cst_4 : f32 to vector<16x1xf32>
    %13 = arith.addf %11, %12 : vector<16x1xf32>
    %14 = math.rsqrt %13 : vector<16x1xf32>
    %15 = vector.broadcast %14 : vector<16x1xf32> to vector<16x128xf32>
    %16 = arith.mulf %6, %15 : vector<16x128xf32>
    %c0_5 = arith.constant 0 : index
    %c0_6 = arith.constant 0 : index
    %17 = vector.load %arg2[%c0_5, %c0_6] : memref<16x128xf32, #tpu.memory_space<vmem>>, vector<16x128xf32>
    %cst_7 = arith.constant dense<0.000000e+00> : vector<16xf32>
    %18 = vector.multi_reduction <add>, %17, %cst_7 [1] : vector<16x128xf32> to vector<16xf32>
    %19 = vector.shape_cast %18 : vector<16xf32> to vector<16x1xf32>
    %cst_8 = arith.constant 1.280000e+02 : f32
    %20 = vector.broadcast %cst_8 : f32 to vector<16x1xf32>
    %21 = arith.divf %19, %20 : vector<16x1xf32>
    %22 = vector.broadcast %21 : vector<16x1xf32> to vector<16x128xf32>
    %23 = arith.subf %17, %22 : vector<16x128xf32>
    %24 = arith.mulf %23, %23 : vector<16x128xf32>
    %cst_9 = arith.constant dense<0.000000e+00> : vector<16xf32>
    %25 = vector.multi_reduction <add>, %24, %cst_9 [1] : vector<16x128xf32> to vector<16xf32>
    %26 = vector.shape_cast %25 : vector<16xf32> to vector<16x1xf32>
    %cst_10 = arith.constant 1.280000e+02 : f32
    %27 = vector.broadcast %cst_10 : f32 to vector<16x1xf32>
    %28 = arith.divf %26, %27 : vector<16x1xf32>
    %cst_11 = arith.constant 9.99999974E-6 : f32
    %29 = vector.broadcast %cst_11 : f32 to vector<16x1xf32>
    %30 = arith.addf %28, %29 : vector<16x1xf32>
    %31 = math.rsqrt %30 : vector<16x1xf32>
    %32 = vector.broadcast %31 : vector<16x1xf32> to vector<16x128xf32>
    %33 = arith.mulf %23, %32 : vector<16x128xf32>
    %34 = arith.truncf %16 : vector<16x128xf32> to vector<16x128xbf16>
    %c0_12 = arith.constant 0 : index
    %c0_13 = arith.constant 0 : index
    %35 = vector.load %arg3[%c0_12, %c0_13] : memref<128x512xbf16, #tpu.memory_space<vmem>>, vector<128x128xbf16>
    %cst_14 = arith.constant dense<0.000000e+00> : vector<16x128xf32>
    %36 = tpu.matmul %34, %35, %cst_14 {dimension_numbers = #tpu.dot_dimension_numbers<[1], [0], [0], [1], [0, 0, 1, 1], [], []>} : vector<16x128xbf16>, vector<128x128xbf16>, vector<16x128xf32> -> vector<16x128xf32>
    %c0_15 = arith.constant 0 : index
    %c0_16 = arith.constant 0 : index
    %37 = vector.load %arg4[%c0_15, %c0_16] : memref<1x512xf32, #tpu.memory_space<vmem>>, vector<1x128xf32>
    %38 = vector.broadcast %37 : vector<1x128xf32> to vector<16x128xf32>
    %39 = arith.addf %36, %38 : vector<16x128xf32>
    %40 = arith.truncf %33 : vector<16x128xf32> to vector<16x128xbf16>
    %c0_17 = arith.constant 0 : index
    %c128 = arith.constant 128 : index
    %41 = vector.load %arg3[%c0_17, %c128] : memref<128x512xbf16, #tpu.memory_space<vmem>>, vector<128x256xbf16>
    %cst_18 = arith.constant dense<0.000000e+00> : vector<16x256xf32>
    %42 = tpu.matmul %40, %41, %cst_18 {dimension_numbers = #tpu.dot_dimension_numbers<[1], [0], [0], [1], [0, 0, 1, 1], [], []>} : vector<16x128xbf16>, vector<128x256xbf16>, vector<16x256xf32> -> vector<16x256xf32>
    %c0_19 = arith.constant 0 : index
    %c128_20 = arith.constant 128 : index
    %43 = vector.load %arg4[%c0_19, %c128_20] : memref<1x512xf32, #tpu.memory_space<vmem>>, vector<1x256xf32>
    %44 = vector.broadcast %43 : vector<1x256xf32> to vector<16x256xf32>
    %45 = arith.addf %42, %44 : vector<16x256xf32>
    %cst_21 = arith.constant 0.176776692 : f32
    %46 = vector.broadcast %cst_21 : f32 to vector<16x128xf32>
    %47 = arith.mulf %39, %46 : vector<16x128xf32>
    %48 = arith.truncf %47 : vector<16x128xf32> to vector<16x128xbf16>
    %c0_22 = arith.constant 0 : index
    %c0_23 = arith.constant 0 : index
    %49 = vector.load %arg6[%c0_22, %c0_23] : memref<16x128xbf16, #tpu.memory_space<vmem>>, vector<16x128xbf16>
    tpu.vector_store %arg6[%c0_22, %c0_23], %48 {strides = array<i32>} : memref<16x128xbf16, #tpu.memory_space<vmem>>, vector<16x128xbf16>,
    %50 = arith.truncf %45 : vector<16x256xf32> to vector<16x256xbf16>
    %c0_24 = arith.constant 0 : index
    %c0_25 = arith.constant 0 : index
    %51 = vector.load %arg7[%c0_24, %c0_25] : memref<16x256xbf16, #tpu.memory_space<vmem>>, vector<16x256xbf16>
    tpu.vector_store %arg7[%c0_24, %c0_25], %50 {strides = array<i32>} : memref<16x256xbf16, #tpu.memory_space<vmem>>, vector<16x256xbf16>,
    %c0_26 = arith.constant 0 : index
    %c0_27 = arith.constant 0 : index
    %52 = vector.load %arg8[%c0_26, %c0_27] : memref<16x128xf32, #tpu.memory_space<vmem>>, vector<16x128xf32>
    tpu.vector_store %arg8[%c0_26, %c0_27], %16 {strides = array<i32>} : memref<16x128xf32, #tpu.memory_space<vmem>>, vector<16x128xf32>,
    %c0_28 = arith.constant 0 : index
    %c0_29 = arith.constant 0 : index
    %53 = vector.load %arg6[%c0_28, %c0_29] : memref<16x128xbf16, #tpu.memory_space<vmem>>, vector<8x128xbf16>
    %c0_30 = arith.constant 0 : index
    %c0_31 = arith.constant 0 : index
    %54 = vector.load %arg7[%c0_30, %c0_31] : memref<16x256xbf16, #tpu.memory_space<vmem>>, vector<8x128xbf16>
    %c0_32 = arith.constant 0 : index
    %c128_33 = arith.constant 128 : index
    %55 = vector.load %arg7[%c0_32, %c128_33] : memref<16x256xbf16, #tpu.memory_space<vmem>>, vector<8x128xbf16>
    %56 = vector.extract_strided_slice %53 {offsets = [0, 0], sizes = [8, 32], strides = [1, 1]} : vector<8x128xbf16> to vector<8x32xbf16>
    %57 = vector.extract_strided_slice %54 {offsets = [0, 0], sizes = [8, 32], strides = [1, 1]} : vector<8x128xbf16> to vector<8x32xbf16>
    %58 = vector.extract_strided_slice %55 {offsets = [0, 0], sizes = [8, 32], strides = [1, 1]} : vector<8x128xbf16> to vector<8x32xbf16>
    %cst_34 = arith.constant dense<0.000000e+00> : vector<8x8xf32>
    %59 = tpu.matmul %56, %57, %cst_34 {dimension_numbers = #tpu.dot_dimension_numbers<[1], [1], [0], [0], [0, 0, 1, 0], [], []>} : vector<8x32xbf16>, vector<8x32xbf16>, vector<8x8xf32> -> vector<8x8xf32>
    %cst_35 = arith.constant dense<0xFF800000> : vector<8xf32>
    %60 = vector.multi_reduction <maximumf>, %59, %cst_35 [1] : vector<8x8xf32> to vector<8xf32>
    %61 = vector.shape_cast %60 : vector<8xf32> to vector<8x1xf32>
    %62 = vector.broadcast %61 : vector<8x1xf32> to vector<8x8xf32>
    %63 = arith.subf %59, %62 : vector<8x8xf32>
    %64 = math.exp %63 : vector<8x8xf32>
    %cst_36 = arith.constant dense<0.000000e+00> : vector<8xf32>
    %65 = vector.multi_reduction <add>, %64, %cst_36 [1] : vector<8x8xf32> to vector<8xf32>
    %66 = vector.shape_cast %65 : vector<8xf32> to vector<8x1xf32>
    %67 = tpu.reciprocal %66 {approx = true} : vector<8x1xf32> -> vector<8x1xf32>
    %68 = vector.broadcast %67 : vector<8x1xf32> to vector<8x8xf32>
    %69 = arith.mulf %64, %68 : vector<8x8xf32>
    %70 = arith.truncf %69 : vector<8x8xf32> to vector<8x8xbf16>
    %cst_37 = arith.constant dense<0.000000e+00> : vector<8x32xf32>
    %71 = tpu.matmul %70, %58, %cst_37 {dimension_numbers = #tpu.dot_dimension_numbers<[1], [0], [0], [1], [0, 0, 1, 1], [], []>} : vector<8x8xbf16>, vector<8x32xbf16>, vector<8x32xf32> -> vector<8x32xf32>
    %72 = vector.extract_strided_slice %53 {offsets = [0, 32], sizes = [8, 32], strides = [1, 1]} : vector<8x128xbf16> to vector<8x32xbf16>
    %73 = vector.extract_strided_slice %54 {offsets = [0, 32], sizes = [8, 32], strides = [1, 1]} : vector<8x128xbf16> to vector<8x32xbf16>
    %74 = vector.extract_strided_slice %55 {offsets = [0, 32], sizes = [8, 32], strides = [1, 1]} : vector<8x128xbf16> to vector<8x32xbf16>
    %cst_38 = arith.constant dense<0.000000e+00> : vector<8x8xf32>
    %75 = tpu.matmul %72, %73, %cst_38 {dimension_numbers = #tpu.dot_dimension_numbers<[1], [1], [0], [0], [0, 0, 1, 0], [], []>} : vector<8x32xbf16>, vector<8x32xbf16>, vector<8x8xf32> -> vector<8x8xf32>
    %cst_39 = arith.constant dense<0xFF800000> : vector<8xf32>
    %76 = vector.multi_reduction <maximumf>, %75, %cst_39 [1] : vector<8x8xf32> to vector<8xf32>
    %77 = vector.shape_cast %76 : vector<8xf32> to vector<8x1xf32>
    %78 = vector.broadcast %77 : vector<8x1xf32> to vector<8x8xf32>
    %79 = arith.subf %75, %78 : vector<8x8xf32>
    %80 = math.exp %79 : vector<8x8xf32>
    %cst_40 = arith.constant dense<0.000000e+00> : vector<8xf32>
    %81 = vector.multi_reduction <add>, %80, %cst_40 [1] : vector<8x8xf32> to vector<8xf32>
    %82 = vector.shape_cast %81 : vector<8xf32> to vector<8x1xf32>
    %83 = tpu.reciprocal %82 {approx = true} : vector<8x1xf32> -> vector<8x1xf32>
    %84 = vector.broadcast %83 : vector<8x1xf32> to vector<8x8xf32>
    %85 = arith.mulf %80, %84 : vector<8x8xf32>
    %86 = arith.truncf %85 : vector<8x8xf32> to vector<8x8xbf16>
    %cst_41 = arith.constant dense<0.000000e+00> : vector<8x32xf32>
    %87 = tpu.matmul %86, %74, %cst_41 {dimension_numbers = #tpu.dot_dimension_numbers<[1], [0], [0], [1], [0, 0, 1, 1], [], []>} : vector<8x8xbf16>, vector<8x32xbf16>, vector<8x32xf32> -> vector<8x32xf32>
    %88 = vector.extract_strided_slice %53 {offsets = [0, 64], sizes = [8, 32], strides = [1, 1]} : vector<8x128xbf16> to vector<8x32xbf16>
    %89 = vector.extract_strided_slice %54 {offsets = [0, 64], sizes = [8, 32], strides = [1, 1]} : vector<8x128xbf16> to vector<8x32xbf16>
    %90 = vector.extract_strided_slice %55 {offsets = [0, 64], sizes = [8, 32], strides = [1, 1]} : vector<8x128xbf16> to vector<8x32xbf16>
    %cst_42 = arith.constant dense<0.000000e+00> : vector<8x8xf32>
    %91 = tpu.matmul %88, %89, %cst_42 {dimension_numbers = #tpu.dot_dimension_numbers<[1], [1], [0], [0], [0, 0, 1, 0], [], []>} : vector<8x32xbf16>, vector<8x32xbf16>, vector<8x8xf32> -> vector<8x8xf32>
    %cst_43 = arith.constant dense<0xFF800000> : vector<8xf32>
    %92 = vector.multi_reduction <maximumf>, %91, %cst_43 [1] : vector<8x8xf32> to vector<8xf32>
    %93 = vector.shape_cast %92 : vector<8xf32> to vector<8x1xf32>
    %94 = vector.broadcast %93 : vector<8x1xf32> to vector<8x8xf32>
    %95 = arith.subf %91, %94 : vector<8x8xf32>
    %96 = math.exp %95 : vector<8x8xf32>
    %cst_44 = arith.constant dense<0.000000e+00> : vector<8xf32>
    %97 = vector.multi_reduction <add>, %96, %cst_44 [1] : vector<8x8xf32> to vector<8xf32>
    %98 = vector.shape_cast %97 : vector<8xf32> to vector<8x1xf32>
    %99 = tpu.reciprocal %98 {approx = true} : vector<8x1xf32> -> vector<8x1xf32>
    %100 = vector.broadcast %99 : vector<8x1xf32> to vector<8x8xf32>
    %101 = arith.mulf %96, %100 : vector<8x8xf32>
    %102 = arith.truncf %101 : vector<8x8xf32> to vector<8x8xbf16>
    %cst_45 = arith.constant dense<0.000000e+00> : vector<8x32xf32>
    %103 = tpu.matmul %102, %90, %cst_45 {dimension_numbers = #tpu.dot_dimension_numbers<[1], [0], [0], [1], [0, 0, 1, 1], [], []>} : vector<8x8xbf16>, vector<8x32xbf16>, vector<8x32xf32> -> vector<8x32xf32>
    %104 = vector.extract_strided_slice %53 {offsets = [0, 96], sizes = [8, 32], strides = [1, 1]} : vector<8x128xbf16> to vector<8x32xbf16>
    %105 = vector.extract_strided_slice %54 {offsets = [0, 96], sizes = [8, 32], strides = [1, 1]} : vector<8x128xbf16> to vector<8x32xbf16>
    %106 = vector.extract_strided_slice %55 {offsets = [0, 96], sizes = [8, 32], strides = [1, 1]} : vector<8x128xbf16> to vector<8x32xbf16>
    %cst_46 = arith.constant dense<0.000000e+00> : vector<8x8xf32>
    %107 = tpu.matmul %104, %105, %cst_46 {dimension_numbers = #tpu.dot_dimension_numbers<[1], [1], [0], [0], [0, 0, 1, 0], [], []>} : vector<8x32xbf16>, vector<8x32xbf16>, vector<8x8xf32> -> vector<8x8xf32>
    %cst_47 = arith.constant dense<0xFF800000> : vector<8xf32>
    %108 = vector.multi_reduction <maximumf>, %107, %cst_47 [1] : vector<8x8xf32> to vector<8xf32>
    %109 = vector.shape_cast %108 : vector<8xf32> to vector<8x1xf32>
    %110 = vector.broadcast %109 : vector<8x1xf32> to vector<8x8xf32>
    %111 = arith.subf %107, %110 : vector<8x8xf32>
    %112 = math.exp %111 : vector<8x8xf32>
    %cst_48 = arith.constant dense<0.000000e+00> : vector<8xf32>
    %113 = vector.multi_reduction <add>, %112, %cst_48 [1] : vector<8x8xf32> to vector<8xf32>
    %114 = vector.shape_cast %113 : vector<8xf32> to vector<8x1xf32>
    %115 = tpu.reciprocal %114 {approx = true} : vector<8x1xf32> -> vector<8x1xf32>
    %116 = vector.broadcast %115 : vector<8x1xf32> to vector<8x8xf32>
    %117 = arith.mulf %112, %116 : vector<8x8xf32>
    %118 = arith.truncf %117 : vector<8x8xf32> to vector<8x8xbf16>
    %cst_49 = arith.constant dense<0.000000e+00> : vector<8x32xf32>
    %119 = tpu.matmul %118, %106, %cst_49 {dimension_numbers = #tpu.dot_dimension_numbers<[1], [0], [0], [1], [0, 0, 1, 1], [], []>} : vector<8x8xbf16>, vector<8x32xbf16>, vector<8x32xf32> -> vector<8x32xf32>
    %120 = tpu.concatenate %71, %87, %103, %119 in 1 : vector<8x32xf32>, vector<8x32xf32>, vector<8x32xf32>, vector<8x32xf32> -> vector<8x128xf32>
    %121 = arith.truncf %120 : vector<8x128xf32> to vector<8x128xbf16>
    %c0_50 = arith.constant 0 : index
    %c384 = arith.constant 384 : index
    %122 = vector.load %arg3[%c0_50, %c384] : memref<128x512xbf16, #tpu.memory_space<vmem>>, vector<128x128xbf16>
    %cst_51 = arith.constant dense<0.000000e+00> : vector<8x128xf32>
    %123 = tpu.matmul %121, %122, %cst_51 {dimension_numbers = #tpu.dot_dimension_numbers<[1], [0], [0], [1], [0, 0, 1, 1], [], []>} : vector<8x128xbf16>, vector<128x128xbf16>, vector<8x128xf32> -> vector<8x128xf32>
    %c0_52 = arith.constant 0 : index
    %c384_53 = arith.constant 384 : index
    %124 = vector.load %arg4[%c0_52, %c384_53] : memref<1x512xf32, #tpu.memory_space<vmem>>, vector<1x128xf32>
    %125 = vector.broadcast %124 : vector<1x128xf32> to vector<8x128xf32>
    %126 = arith.addf %123, %125 : vector<8x128xf32>
    %c0_54 = arith.constant 0 : index
    %c0_55 = arith.constant 0 : index
    %127 = vector.load %arg8[%c0_54, %c0_55] : memref<16x128xf32, #tpu.memory_space<vmem>>, vector<8x128xf32>
    %128 = arith.addf %126, %127 : vector<8x128xf32>
    %129 = vector.shape_cast %128 : vector<8x128xf32> to vector<8x1x128xf32>
    %c0_56 = arith.constant 0 : index
    %c0_57 = arith.constant 0 : index
    %c0_58 = arith.constant 0 : index
    %130 = vector.load %arg5[%c0_56, %c0_57, %c0_58] : memref<8x2x128xf32, #tpu.memory_space<vmem>>, vector<8x1x128xf32>
    tpu.vector_store %arg5[%c0_56, %c0_57, %c0_58], %129 {strides = array<i32>} : memref<8x2x128xf32, #tpu.memory_space<vmem>>, vector<8x1x128xf32>,
    %c8 = arith.constant 8 : index
    %c0_59 = arith.constant 0 : index
    %131 = vector.load %arg6[%c8, %c0_59] : memref<16x128xbf16, #tpu.memory_space<vmem>>, vector<8x128xbf16>
    %c8_60 = arith.constant 8 : index
    %c0_61 = arith.constant 0 : index
    %132 = vector.load %arg7[%c8_60, %c0_61] : memref<16x256xbf16, #tpu.memory_space<vmem>>, vector<8x128xbf16>
    %c8_62 = arith.constant 8 : index
    %c128_63 = arith.constant 128 : index
    %133 = vector.load %arg7[%c8_62, %c128_63] : memref<16x256xbf16, #tpu.memory_space<vmem>>, vector<8x128xbf16>
    %134 = vector.extract_strided_slice %131 {offsets = [0, 0], sizes = [8, 32], strides = [1, 1]} : vector<8x128xbf16> to vector<8x32xbf16>
    %135 = vector.extract_strided_slice %132 {offsets = [0, 0], sizes = [8, 32], strides = [1, 1]} : vector<8x128xbf16> to vector<8x32xbf16>
    %136 = vector.extract_strided_slice %133 {offsets = [0, 0], sizes = [8, 32], strides = [1, 1]} : vector<8x128xbf16> to vector<8x32xbf16>
    %cst_64 = arith.constant dense<0.000000e+00> : vector<8x8xf32>
    %137 = tpu.matmul %134, %135, %cst_64 {dimension_numbers = #tpu.dot_dimension_numbers<[1], [1], [0], [0], [0, 0, 1, 0], [], []>} : vector<8x32xbf16>, vector<8x32xbf16>, vector<8x8xf32> -> vector<8x8xf32>
    %cst_65 = arith.constant dense<0xFF800000> : vector<8xf32>
    %138 = vector.multi_reduction <maximumf>, %137, %cst_65 [1] : vector<8x8xf32> to vector<8xf32>
    %139 = vector.shape_cast %138 : vector<8xf32> to vector<8x1xf32>
    %140 = vector.broadcast %139 : vector<8x1xf32> to vector<8x8xf32>
    %141 = arith.subf %137, %140 : vector<8x8xf32>
    %142 = math.exp %141 : vector<8x8xf32>
    %cst_66 = arith.constant dense<0.000000e+00> : vector<8xf32>
    %143 = vector.multi_reduction <add>, %142, %cst_66 [1] : vector<8x8xf32> to vector<8xf32>
    %144 = vector.shape_cast %143 : vector<8xf32> to vector<8x1xf32>
    %145 = tpu.reciprocal %144 {approx = true} : vector<8x1xf32> -> vector<8x1xf32>
    %146 = vector.broadcast %145 : vector<8x1xf32> to vector<8x8xf32>
    %147 = arith.mulf %142, %146 : vector<8x8xf32>
    %148 = arith.truncf %147 : vector<8x8xf32> to vector<8x8xbf16>
    %cst_67 = arith.constant dense<0.000000e+00> : vector<8x32xf32>
    %149 = tpu.matmul %148, %136, %cst_67 {dimension_numbers = #tpu.dot_dimension_numbers<[1], [0], [0], [1], [0, 0, 1, 1], [], []>} : vector<8x8xbf16>, vector<8x32xbf16>, vector<8x32xf32> -> vector<8x32xf32>
    %150 = vector.extract_strided_slice %131 {offsets = [0, 32], sizes = [8, 32], strides = [1, 1]} : vector<8x128xbf16> to vector<8x32xbf16>
    %151 = vector.extract_strided_slice %132 {offsets = [0, 32], sizes = [8, 32], strides = [1, 1]} : vector<8x128xbf16> to vector<8x32xbf16>
    %152 = vector.extract_strided_slice %133 {offsets = [0, 32], sizes = [8, 32], strides = [1, 1]} : vector<8x128xbf16> to vector<8x32xbf16>
    %cst_68 = arith.constant dense<0.000000e+00> : vector<8x8xf32>
    %153 = tpu.matmul %150, %151, %cst_68 {dimension_numbers = #tpu.dot_dimension_numbers<[1], [1], [0], [0], [0, 0, 1, 0], [], []>} : vector<8x32xbf16>, vector<8x32xbf16>, vector<8x8xf32> -> vector<8x8xf32>
    %cst_69 = arith.constant dense<0xFF800000> : vector<8xf32>
    %154 = vector.multi_reduction <maximumf>, %153, %cst_69 [1] : vector<8x8xf32> to vector<8xf32>
    %155 = vector.shape_cast %154 : vector<8xf32> to vector<8x1xf32>
    %156 = vector.broadcast %155 : vector<8x1xf32> to vector<8x8xf32>
    %157 = arith.subf %153, %156 : vector<8x8xf32>
    %158 = math.exp %157 : vector<8x8xf32>
    %cst_70 = arith.constant dense<0.000000e+00> : vector<8xf32>
    %159 = vector.multi_reduction <add>, %158, %cst_70 [1] : vector<8x8xf32> to vector<8xf32>
    %160 = vector.shape_cast %159 : vector<8xf32> to vector<8x1xf32>
    %161 = tpu.reciprocal %160 {approx = true} : vector<8x1xf32> -> vector<8x1xf32>
    %162 = vector.broadcast %161 : vector<8x1xf32> to vector<8x8xf32>
    %163 = arith.mulf %158, %162 : vector<8x8xf32>
    %164 = arith.truncf %163 : vector<8x8xf32> to vector<8x8xbf16>
    %cst_71 = arith.constant dense<0.000000e+00> : vector<8x32xf32>
    %165 = tpu.matmul %164, %152, %cst_71 {dimension_numbers = #tpu.dot_dimension_numbers<[1], [0], [0], [1], [0, 0, 1, 1], [], []>} : vector<8x8xbf16>, vector<8x32xbf16>, vector<8x32xf32> -> vector<8x32xf32>
    %166 = vector.extract_strided_slice %131 {offsets = [0, 64], sizes = [8, 32], strides = [1, 1]} : vector<8x128xbf16> to vector<8x32xbf16>
    %167 = vector.extract_strided_slice %132 {offsets = [0, 64], sizes = [8, 32], strides = [1, 1]} : vector<8x128xbf16> to vector<8x32xbf16>
    %168 = vector.extract_strided_slice %133 {offsets = [0, 64], sizes = [8, 32], strides = [1, 1]} : vector<8x128xbf16> to vector<8x32xbf16>
    %cst_72 = arith.constant dense<0.000000e+00> : vector<8x8xf32>
    %169 = tpu.matmul %166, %167, %cst_72 {dimension_numbers = #tpu.dot_dimension_numbers<[1], [1], [0], [0], [0, 0, 1, 0], [], []>} : vector<8x32xbf16>, vector<8x32xbf16>, vector<8x8xf32> -> vector<8x8xf32>
    %cst_73 = arith.constant dense<0xFF800000> : vector<8xf32>
    %170 = vector.multi_reduction <maximumf>, %169, %cst_73 [1] : vector<8x8xf32> to vector<8xf32>
    %171 = vector.shape_cast %170 : vector<8xf32> to vector<8x1xf32>
    %172 = vector.broadcast %171 : vector<8x1xf32> to vector<8x8xf32>
    %173 = arith.subf %169, %172 : vector<8x8xf32>
    %174 = math.exp %173 : vector<8x8xf32>
    %cst_74 = arith.constant dense<0.000000e+00> : vector<8xf32>
    %175 = vector.multi_reduction <add>, %174, %cst_74 [1] : vector<8x8xf32> to vector<8xf32>
    %176 = vector.shape_cast %175 : vector<8xf32> to vector<8x1xf32>
    %177 = tpu.reciprocal %176 {approx = true} : vector<8x1xf32> -> vector<8x1xf32>
    %178 = vector.broadcast %177 : vector<8x1xf32> to vector<8x8xf32>
    %179 = arith.mulf %174, %178 : vector<8x8xf32>
    %180 = arith.truncf %179 : vector<8x8xf32> to vector<8x8xbf16>
    %cst_75 = arith.constant dense<0.000000e+00> : vector<8x32xf32>
    %181 = tpu.matmul %180, %168, %cst_75 {dimension_numbers = #tpu.dot_dimension_numbers<[1], [0], [0], [1], [0, 0, 1, 1], [], []>} : vector<8x8xbf16>, vector<8x32xbf16>, vector<8x32xf32> -> vector<8x32xf32>
    %182 = vector.extract_strided_slice %131 {offsets = [0, 96], sizes = [8, 32], strides = [1, 1]} : vector<8x128xbf16> to vector<8x32xbf16>
    %183 = vector.extract_strided_slice %132 {offsets = [0, 96], sizes = [8, 32], strides = [1, 1]} : vector<8x128xbf16> to vector<8x32xbf16>
    %184 = vector.extract_strided_slice %133 {offsets = [0, 96], sizes = [8, 32], strides = [1, 1]} : vector<8x128xbf16> to vector<8x32xbf16>
    %cst_76 = arith.constant dense<0.000000e+00> : vector<8x8xf32>
    %185 = tpu.matmul %182, %183, %cst_76 {dimension_numbers = #tpu.dot_dimension_numbers<[1], [1], [0], [0], [0, 0, 1, 0], [], []>} : vector<8x32xbf16>, vector<8x32xbf16>, vector<8x8xf32> -> vector<8x8xf32>
    %cst_77 = arith.constant dense<0xFF800000> : vector<8xf32>
    %186 = vector.multi_reduction <maximumf>, %185, %cst_77 [1] : vector<8x8xf32> to vector<8xf32>
    %187 = vector.shape_cast %186 : vector<8xf32> to vector<8x1xf32>
    %188 = vector.broadcast %187 : vector<8x1xf32> to vector<8x8xf32>
    %189 = arith.subf %185, %188 : vector<8x8xf32>
    %190 = math.exp %189 : vector<8x8xf32>
    %cst_78 = arith.constant dense<0.000000e+00> : vector<8xf32>
    %191 = vector.multi_reduction <add>, %190, %cst_78 [1] : vector<8x8xf32> to vector<8xf32>
    %192 = vector.shape_cast %191 : vector<8xf32> to vector<8x1xf32>
    %193 = tpu.reciprocal %192 {approx = true} : vector<8x1xf32> -> vector<8x1xf32>
    %194 = vector.broadcast %193 : vector<8x1xf32> to vector<8x8xf32>
    %195 = arith.mulf %190, %194 : vector<8x8xf32>
    %196 = arith.truncf %195 : vector<8x8xf32> to vector<8x8xbf16>
    %cst_79 = arith.constant dense<0.000000e+00> : vector<8x32xf32>
    %197 = tpu.matmul %196, %184, %cst_79 {dimension_numbers = #tpu.dot_dimension_numbers<[1], [0], [0], [1], [0, 0, 1, 1], [], []>} : vector<8x8xbf16>, vector<8x32xbf16>, vector<8x32xf32> -> vector<8x32xf32>
    %198 = tpu.concatenate %149, %165, %181, %197 in 1 : vector<8x32xf32>, vector<8x32xf32>, vector<8x32xf32>, vector<8x32xf32> -> vector<8x128xf32>
    %199 = arith.truncf %198 : vector<8x128xf32> to vector<8x128xbf16>
    %c0_80 = arith.constant 0 : index
    %c384_81 = arith.constant 384 : index
    %200 = vector.load %arg3[%c0_80, %c384_81] : memref<128x512xbf16, #tpu.memory_space<vmem>>, vector<128x128xbf16>
    %cst_82 = arith.constant dense<0.000000e+00> : vector<8x128xf32>
    %201 = tpu.matmul %199, %200, %cst_82 {dimension_numbers = #tpu.dot_dimension_numbers<[1], [0], [0], [1], [0, 0, 1, 1], [], []>} : vector<8x128xbf16>, vector<128x128xbf16>, vector<8x128xf32> -> vector<8x128xf32>
    %c0_83 = arith.constant 0 : index
    %c384_84 = arith.constant 384 : index
    %202 = vector.load %arg4[%c0_83, %c384_84] : memref<1x512xf32, #tpu.memory_space<vmem>>, vector<1x128xf32>
    %203 = vector.broadcast %202 : vector<1x128xf32> to vector<8x128xf32>
    %204 = arith.addf %201, %203 : vector<8x128xf32>
    %c8_85 = arith.constant 8 : index
    %c0_86 = arith.constant 0 : index
    %205 = vector.load %arg8[%c8_85, %c0_86] : memref<16x128xf32, #tpu.memory_space<vmem>>, vector<8x128xf32>
    %206 = arith.addf %204, %205 : vector<8x128xf32>
    %207 = vector.shape_cast %206 : vector<8x128xf32> to vector<8x1x128xf32>
    %c0_87 = arith.constant 0 : index
    %c1 = arith.constant 1 : index
    %c0_88 = arith.constant 0 : index
    %208 = vector.load %arg5[%c0_87, %c1, %c0_88] : memref<8x2x128xf32, #tpu.memory_space<vmem>>, vector<8x1x128xf32>
    tpu.vector_store %arg5[%c0_87, %c1, %c0_88], %207 {strides = array<i32>} : memref<8x2x128xf32, #tpu.memory_space<vmem>>, vector<8x1x128xf32>,
    return
  }
  func.func @transform_0(%arg0: i32) -> (i32, i32) {
    %c0_i32 = arith.constant 0 : i32
    %c0_i32_0 = arith.constant 0 : i32
    return %arg0, %c0_i32 : i32, i32
  }
  func.func @transform_1(%arg0: i32) -> (i32, i32) {
    %c0_i32 = arith.constant 0 : i32
    %c0_i32_0 = arith.constant 0 : i32
    return %arg0, %c0_i32 : i32, i32
  }
  func.func @transform_2(%arg0: i32) -> (i32, i32) {
    %c0_i32 = arith.constant 0 : i32
    %c0_i32_0 = arith.constant 0 : i32
    %c0_i32_1 = arith.constant 0 : i32
    return %c0_i32, %c0_i32_0 : i32, i32
  }
  func.func @transform_3(%arg0: i32) -> (i32, i32) {
    %c0_i32 = arith.constant 0 : i32
    %c0_i32_0 = arith.constant 0 : i32
    %c0_i32_1 = arith.constant 0 : i32
    return %c0_i32, %c0_i32_0 : i32, i32
  }
  func.func @transform_4(%arg0: i32) -> (i32, i32, i32) {
    %c0_i32 = arith.constant 0 : i32
    %c0_i32_0 = arith.constant 0 : i32
    %c0_i32_1 = arith.constant 0 : i32
    return %c0_i32, %arg0, %c0_i32_0 : i32, i32, i32
  }
}

</mosaic_0001>

<llo_original>
// kernel: tpu_custom_call.1
$region0: #{tpu_custom_call.1}
  #allocation0 [shape = 'u32[]', space=smem, size = 0x4, offset = 0x4, fixed_abs, tag = 'smem constant byte address 0x4 - core index']
  #allocation1 [shape = 'u32[144,128]{1,0:T(1,128)}', space=vmem, size = 0x12000, scoped, tag = 'internal scratch']
  #allocation2 [shape = 'bf16[16,128]{1,0:T(16,128)(2,1)}', space=vmem, size = 0x1000, scoped, tag = 'scratch operand']
  #allocation3 [shape = 'bf16[16,256]{1,0:T(16,128)(2,1)}', space=vmem, size = 0x2000, scoped, tag = 'scratch operand']
  #allocation4 [shape = 'f32[16,128]{1,0:T(8,128)}', space=vmem, size = 0x2000, scoped, tag = 'scratch operand']
  %s0 = inlined_call_operand.hbm [shape: f32[16,128], index: 0, kind: input, shape index: {}]
  %s1 = inlined_call_operand.hbm [shape: f32[16,128], index: 1, kind: input, shape index: {}]
  %s2 = inlined_call_operand.hbm [shape: bf16[128,512], index: 2, kind: input, shape index: {}]
  %s3 = inlined_call_operand.vmem [shape: f32[1,512], index: 3, kind: input, shape index: {}]
  %s4 = inlined_call_operand.hbm [shape: f32[8,2,128], index: 4, kind: output, shape index: {}]
  %s5 = sld [smem:[#allocation0]]
  $region38: #{tpu_custom_call.1} parent=0
    _
  %s7 = ssub.s32 1, %s5
  %s8 = scalar_select 0, %s7, %s5
  $region1: #{tpu_custom_call.1} parent=0
    #allocation5 [shape = 'u8[8192]{0}', space=vmem, size = 0x2000, scoped, tag = 'input window, operand 0, single buffered']
    #allocation6 [shape = 's32[1]{0}', space=sflag, size = 0x4, scoped, tag = 'scoped memory for tpu_custom_call.1']
    #allocation7 [shape = 's32[1]{0}', space=sflag, size = 0x4, scoped, tag = 'scoped memory for tpu_custom_call.1']
    #allocation8 [shape = 'u8[8192]{0}', space=vmem, size = 0x2000, scoped, tag = 'input window, operand 1, single buffered']
    #allocation9 [shape = 's32[1]{0}', space=sflag, size = 0x4, scoped, tag = 'scoped memory for tpu_custom_call.1']
    #allocation10 [shape = 'u8[131072]{0}', space=vmem, size = 0x20000, scoped, tag = 'input window, operand 2, single buffered']
    #allocation11 [shape = 'u8[8192]{0}', space=vmem, size = 0x2000, scoped, tag = 'output window, operand 0, single buffered']
    %9 = vsyncpa [#allocation6], 0
    %10 = vsyncpa [#allocation9], 0
    %11 = vsyncpa [#allocation7], 0
    // Predicated region
    $region2: #{tpu_custom_call.1} parent=1 // pred_check
      _
    $region3: #{tpu_custom_call.1} parent=1 // pred_check_branch
      %13 = sbr.rel (0) target = $region5
    $region4: #{tpu_custom_call.1} parent=1 // pred_region
      %s15 = ssub.s32 256, 256
      %16 = vsyncadd [#allocation6], %s15
      %s17 = sshll.u32 [#allocation5], 4
      %s18 = int_to_ptr.vmem [resolvable:$true] %s17
      %23 = dma.hbm_to_vmem [thread:$0]  %s0, 256, %s18, [#allocation6], 128, 128, 8
    $region5: #{tpu_custom_call.1} parent=1 // pred_fallthru
      _
    // Predicated region
    $region6: #{tpu_custom_call.1} parent=1 // pred_check
      _
    $region7: #{tpu_custom_call.1} parent=1 // pred_check_branch
      %25 = sbr.rel (0) target = $region9
    $region8: #{tpu_custom_call.1} parent=1 // pred_region
      %s27 = ssub.s32 256, 256
      %28 = vsyncadd [#allocation9], %s27
      %s29 = sshll.u32 [#allocation8], 4
      %s30 = int_to_ptr.vmem [resolvable:$true] %s29
      %35 = dma.hbm_to_vmem [thread:$0]  %s1, 256, %s30, [#allocation9], 128, 128, 8
    $region9: #{tpu_custom_call.1} parent=1 // pred_fallthru
      _
    // Predicated region
    $region10: #{tpu_custom_call.1} parent=1 // pred_check
      _
    $region11: #{tpu_custom_call.1} parent=1 // pred_check_branch
      %37 = sbr.rel (0) target = $region13
    $region12: #{tpu_custom_call.1} parent=1 // pred_region
      %s39 = ssub.s32 4096, 4096
      %40 = vsyncadd [#allocation9], %s39
      %s41 = sshll.u32 [#allocation10], 4
      %s42 = int_to_ptr.vmem [resolvable:$true] %s41
      %47 = dma.hbm_to_vmem [thread:$0]  %s2, 4096, %s42, [#allocation9], 256, 256, 16
    $region13: #{tpu_custom_call.1} parent=1 // pred_fallthru
      _
    // Predicated region
    $region14: #{tpu_custom_call.1} parent=1 // pred_check
      _
    $region15: #{tpu_custom_call.1} parent=1 // pred_check_branch
      %49 = sbr.rel (0) target = $region17
    $region16: #{tpu_custom_call.1} parent=1 // pred_region
      _
    $region17: #{tpu_custom_call.1} parent=1 // pred_fallthru
      _
    // Predicated region
    $region18: #{tpu_custom_call.1} parent=1 // pred_check
      _
    $region19: #{tpu_custom_call.1} parent=1 // pred_check_branch
      %51 = sbr.rel (0) target = $region21
    $region20: #{tpu_custom_call.1} parent=1 // pred_region
      %52 = dma.done [#allocation6], 256
    $region21: #{tpu_custom_call.1} parent=1 // pred_fallthru
      _
    // Predicated region
    $region22: #{tpu_custom_call.1} parent=1 // pred_check
      _
    $region23: #{tpu_custom_call.1} parent=1 // pred_check_branch
      %54 = sbr.rel (0) target = $region25
    $region24: #{tpu_custom_call.1} parent=1 // pred_region
      %55 = dma.done [#allocation9], 256
    $region25: #{tpu_custom_call.1} parent=1 // pred_fallthru
      _
    // Predicated region
    $region26: #{tpu_custom_call.1} parent=1 // pred_check
      _
    $region27: #{tpu_custom_call.1} parent=1 // pred_check_branch
      %57 = sbr.rel (0) target = $region29
    $region28: #{tpu_custom_call.1} parent=1 // pred_region
      %58 = dma.done [#allocation9], 4096
    $region29: #{tpu_custom_call.1} parent=1 // pred_fallthru
      _
    %v60 = vld [vmem:[#allocation5] sm:$0xff]
    %v61 = vld [vmem:[#allocation5 + $0x8] sm:$0xff]
    %62 = vadd.xlane.f32.xlu0 %v60
    %v63 = vpop.xlane.xlu0 %62
    %64 = vadd.xlane.f32.xlu0 %v61
    %v65 = vpop.xlane.xlu0 %64
    %v66 = vrcp.pop 128.0
    %v67 = vmul.f32 %v63, %v66
    %v68 = vmul.f32 %v65, %v66
    %v69 = vsub.f32 %v60, %v67
    %v70 = vsub.f32 %v61, %v68
    %v71 = vmul.f32 %v69, %v69
    %v72 = vmul.f32 %v70, %v70
    %73 = vadd.xlane.f32.xlu0 %v71
    %v74 = vpop.xlane.xlu0 %73
    %75 = vadd.xlane.f32.xlu0 %v72
    %v76 = vpop.xlane.xlu0 %75
    %v77 = vmul.f32 %v74, %v66
    %v78 = vmul.f32 %v76, %v66
    %v79 = vadd.f32 %v77, 1e-05
    %v80 = vadd.f32 %v78, 1e-05
    %v81 = vrsqrt.pop %v79
    %v82 = vrsqrt.pop %v80
    %v83 = vmul.f32 %v69, %v81
    %v84 = vmul.f32 %v70, %v82
    %v85 = vld [vmem:[#allocation8] sm:$0xff]
    %v86 = vld [vmem:[#allocation8 + $0x8] sm:$0xff]
    %87 = vadd.xlane.f32.xlu0 %v85
    %v88 = vpop.xlane.xlu0 %87
    %89 = vadd.xlane.f32.xlu0 %v86
    %v90 = vpop.xlane.xlu0 %89
    %v91 = vmul.f32 %v88, %v66
    %v92 = vmul.f32 %v90, %v66
    %v93 = vsub.f32 %v85, %v91
    %v94 = vsub.f32 %v86, %v92
    %v95 = vmul.f32 %v93, %v93
    %v96 = vmul.f32 %v94, %v94
    %97 = vadd.xlane.f32.xlu0 %v95
    %v98 = vpop.xlane.xlu0 %97
    %99 = vadd.xlane.f32.xlu0 %v96
    %v100 = vpop.xlane.xlu0 %99
    %v101 = vmul.f32 %v98, %v66
    %v102 = vmul.f32 %v100, %v66
    %v103 = vadd.f32 %v101, 1e-05
    %v104 = vadd.f32 %v102, 1e-05
    %v105 = vrsqrt.pop %v103
    %v106 = vrsqrt.pop %v104
    %v107 = vmul.f32 %v93, %v105
    %v108 = vmul.f32 %v94, %v106
    %v109 = vpack.c.bf16 %v84, %v83
    %v110 = vld [vmem:[#allocation10] sm:$0xf]
    %v111 = vld [vmem:[#allocation10 + $0x10] sm:$0xf]
    %v112 = vld [vmem:[#allocation10 + $0x20] sm:$0xf]
    %v113 = vld [vmem:[#allocation10 + $0x30] sm:$0xf]
    %v114 = vld [vmem:[#allocation10 + $0x40] sm:$0xf]
    %v115 = vld [vmem:[#allocation10 + $0x50] sm:$0xf]
    %v116 = vld [vmem:[#allocation10 + $0x60] sm:$0xf]
    %v117 = vld [vmem:[#allocation10 + $0x70] sm:$0xf]
    %v118 = vld [vmem:[#allocation10 + $0x80] sm:$0xf]
    %v119 = vld [vmem:[#allocation10 + $0x90] sm:$0xf]
    %v120 = vld [vmem:[#allocation10 + $0xa0] sm:$0xf]
    %v121 = vld [vmem:[#allocation10 + $0xb0] sm:$0xf]
    %v122 = vld [vmem:[#allocation10 + $0xc0] sm:$0xf]
    %v123 = vld [vmem:[#allocation10 + $0xd0] sm:$0xf]
    %v124 = vld [vmem:[#allocation10 + $0xe0] sm:$0xf]
    %v125 = vld [vmem:[#allocation10 + $0xf0] sm:$0xf]
    %v126 = vld [vmem:[%s3] sm:$0x1]
    %v128 = vlaneseq
    %v129 = vshrl.u32 %v128, 7
    %v130 = vsub.s32 0, %v129
    %v131 = vrot.slane %v126, %v130
    %v149 = vunpack.c.l.b16 %v110
    %v150 = vunpack.c.l.b16 %v111
    %v151 = vunpack.c.l.b16 %v112
    %v152 = vunpack.c.l.b16 %v113
    %v153 = vunpack.c.l.b16 %v114
    %v154 = vunpack.c.l.b16 %v115
    %v155 = vunpack.c.l.b16 %v116
    %v156 = vunpack.c.l.b16 %v117
    %v157 = vunpack.c.l.b16 %v118
    %v158 = vunpack.c.l.b16 %v119
    %v159 = vunpack.c.l.b16 %v120
    %v160 = vunpack.c.l.b16 %v121
    %v161 = vunpack.c.l.b16 %v122
    %v162 = vunpack.c.l.b16 %v123
    %v163 = vunpack.c.l.b16 %v124
    %v164 = vunpack.c.l.b16 %v125
    %v165 = vpack.c.b16 %v150, %v149
    %v166 = vpack.c.b16 %v152, %v151
    %v167 = vpack.c.b16 %v154, %v153
    %v168 = vpack.c.b16 %v156, %v155
    %v169 = vpack.c.b16 %v158, %v157
    %v170 = vpack.c.b16 %v160, %v159
    %v171 = vpack.c.b16 %v162, %v161
    %v172 = vpack.c.b16 %v164, %v163
    %181 = vmatprep.subr.bf16.mxu0 0
    %182 = vmatpush1.bf16.msra.mxu0 %v165
    %183 = vmatprep.subr.bf16.mxu0 0
    %184 = vmatpush1.bf16.msra.mxu0 %v166
    %185 = vmatprep.subr.bf16.mxu0 0
    %186 = vmatpush1.bf16.msra.mxu0 %v167
    %187 = vmatprep.subr.bf16.mxu0 0
    %188 = vmatpush1.bf16.msra.mxu0 %v168
    %189 = vmatprep.subr.bf16.mxu0 0
    %190 = vmatpush1.bf16.msra.mxu0 %v169
    %191 = vmatprep.subr.bf16.mxu0 0
    %192 = vmatpush1.bf16.msra.mxu0 %v170
    %193 = vmatprep.subr.bf16.mxu0 0
    %194 = vmatpush1.bf16.msra.mxu0 %v171
    %195 = vmatprep.subr.bf16.mxu0 0
    %196 = vmatpush1.bf16.msra.mxu0 %v172
    %197 = vmatprep.subr.bf16.mxu0 0
    %198 = vmatpush1.bf16.msra.mxu0 0
    %199 = vmatprep.subr.bf16.mxu0 0
    %200 = vmatpush1.bf16.msra.mxu0 0
    %201 = vmatprep.subr.bf16.mxu0 0
    %202 = vmatpush1.bf16.msra.mxu0 0
    %203 = vmatprep.subr.bf16.mxu0 0
    %204 = vmatpush1.bf16.msra.mxu0 0
    %205 = vmatprep.subr.bf16.mxu0 0
    %206 = vmatpush1.bf16.msra.mxu0 0
    %207 = vmatprep.subr.bf16.mxu0 0
    %208 = vmatpush1.bf16.msra.mxu0 0
    %209 = vmatprep.subr.bf16.mxu0 0
    %210 = vmatpush1.bf16.msra.mxu0 0
    %211 = vmatprep.subr.bf16.mxu0 0
    %212 = vmatpush1.bf16.msra.mxu0 0
    %213 = vmatprep.mubr.bf16.mxu0 0
    %214 = vmatmul.mubr.bf16.gmra.mrb[0].mxu0 %v109
    %v215 = vpop.f32.mrb[0].mxu0
    %v216 = vadd.f32 %v131, %v215
    %v217 = vpop.f32.mrb[0].mxu0
    %v218 = vpop.f32.mrb[0].mxu0
    %v219 = vadd.f32 %v131, %v218
    %v220 = vpop.f32.mrb[0].mxu0
    %221 = vdwg.mxu0
    %v222 = vpack.c.bf16 %v108, %v107
    %v223 = vld [vmem:[#allocation10 + $0x4] sm:$0xff]
    %v224 = vld [vmem:[#allocation10 + $0x14] sm:$0xff]
    %v225 = vld [vmem:[#allocation10 + $0x24] sm:$0xff]
    %v226 = vld [vmem:[#allocation10 + $0x34] sm:$0xff]
    %v227 = vld [vmem:[#allocation10 + $0x44] sm:$0xff]
    %v228 = vld [vmem:[#allocation10 + $0x54] sm:$0xff]
    %v229 = vld [vmem:[#allocation10 + $0x64] sm:$0xff]
    %v230 = vld [vmem:[#allocation10 + $0x74] sm:$0xff]
    %v231 = vld [vmem:[#allocation10 + $0x84] sm:$0xff]
    %v232 = vld [vmem:[#allocation10 + $0x94] sm:$0xff]
    %v233 = vld [vmem:[#allocation10 + $0xa4] sm:$0xff]
    %v234 = vld [vmem:[#allocation10 + $0xb4] sm:$0xff]
    %v235 = vld [vmem:[#allocation10 + $0xc4] sm:$0xff]
    %v236 = vld [vmem:[#allocation10 + $0xd4] sm:$0xff]
    %v237 = vld [vmem:[#allocation10 + $0xe4] sm:$0xff]
    %v238 = vld [vmem:[#allocation10 + $0xf4] sm:$0xff]
    %v239 = vld [vmem:[%s3 + $0x1] sm:$0x3]
    %v241 = vlaneseq
    %v242 = vshrl.u32 %v241, 7
    %v243 = vsub.s32 0, %v242
    %v244 = vrot.slane %v239, %v243
    %v245 = vlaneseq
    %v246 = vshrl.u32 %v245, 7
    %v247 = vsub.s32 1, %v246
    %v248 = vrot.slane %v239, %v247
    %v267 = vunpack.c.l.b16 %v223
    %v268 = vunpack.c.h.b16 %v223
    %v269 = vunpack.c.l.b16 %v224
    %v270 = vunpack.c.h.b16 %v224
    %v271 = vunpack.c.l.b16 %v225
    %v272 = vunpack.c.h.b16 %v225
    %v273 = vunpack.c.l.b16 %v226
    %v274 = vunpack.c.h.b16 %v226
    %v275 = vunpack.c.l.b16 %v227
    %v276 = vunpack.c.h.b16 %v227
    %v277 = vunpack.c.l.b16 %v228
    %v278 = vunpack.c.h.b16 %v228
    %v279 = vunpack.c.l.b16 %v229
    %v280 = vunpack.c.h.b16 %v229
    %v281 = vunpack.c.l.b16 %v230
    %v282 = vunpack.c.h.b16 %v230
    %v283 = vunpack.c.l.b16 %v231
    %v284 = vunpack.c.h.b16 %v231
    %v285 = vunpack.c.l.b16 %v232
    %v286 = vunpack.c.h.b16 %v232
    %v287 = vunpack.c.l.b16 %v233
    %v288 = vunpack.c.h.b16 %v233
    %v289 = vunpack.c.l.b16 %v234
    %v290 = vunpack.c.h.b16 %v234
    %v291 = vunpack.c.l.b16 %v235
    %v292 = vunpack.c.h.b16 %v235
    %v293 = vunpack.c.l.b16 %v236
    %v294 = vunpack.c.h.b16 %v236
    %v295 = vunpack.c.l.b16 %v237
    %v296 = vunpack.c.h.b16 %v237
    %v297 = vunpack.c.l.b16 %v238
    %v298 = vunpack.c.h.b16 %v238
    %v299 = vpack.c.b16 %v269, %v267
    %v300 = vpack.c.b16 %v270, %v268
    %v301 = vpack.c.b16 %v273, %v271
    %v302 = vpack.c.b16 %v274, %v272
    %v303 = vpack.c.b16 %v277, %v275
    %v304 = vpack.c.b16 %v278, %v276
    %v305 = vpack.c.b16 %v281, %v279
    %v306 = vpack.c.b16 %v282, %v280
    %v307 = vpack.c.b16 %v285, %v283
    %v308 = vpack.c.b16 %v286, %v284
    %v309 = vpack.c.b16 %v289, %v287
    %v310 = vpack.c.b16 %v290, %v288
    %v311 = vpack.c.b16 %v293, %v291
    %v312 = vpack.c.b16 %v294, %v292
    %v313 = vpack.c.b16 %v297, %v295
    %v314 = vpack.c.b16 %v298, %v296
    %331 = vmatprep.subr.bf16.mxu0 %v300
    %332 = vmatpush1.bf16.msra.mxu0 %v299
    %333 = vmatprep.subr.bf16.mxu0 %v302
    %334 = vmatpush1.bf16.msra.mxu0 %v301
    %335 = vmatprep.subr.bf16.mxu0 %v304
    %336 = vmatpush1.bf16.msra.mxu0 %v303
    %337 = vmatprep.subr.bf16.mxu0 %v306
    %338 = vmatpush1.bf16.msra.mxu0 %v305
    %339 = vmatprep.subr.bf16.mxu0 %v308
    %340 = vmatpush1.bf16.msra.mxu0 %v307
    %341 = vmatprep.subr.bf16.mxu0 %v310
    %342 = vmatpush1.bf16.msra.mxu0 %v309
    %343 = vmatprep.subr.bf16.mxu0 %v312
    %344 = vmatpush1.bf16.msra.mxu0 %v311
    %345 = vmatprep.subr.bf16.mxu0 %v314
    %346 = vmatpush1.bf16.msra.mxu0 %v313
    %347 = vmatprep.subr.bf16.mxu0 0
    %348 = vmatpush1.bf16.msra.mxu0 0
    %349 = vmatprep.subr.bf16.mxu0 0
    %350 = vmatpush1.bf16.msra.mxu0 0
    %351 = vmatprep.subr.bf16.mxu0 0
    %352 = vmatpush1.bf16.msra.mxu0 0
    %353 = vmatprep.subr.bf16.mxu0 0
    %354 = vmatpush1.bf16.msra.mxu0 0
    %355 = vmatprep.subr.bf16.mxu0 0
    %356 = vmatpush1.bf16.msra.mxu0 0
    %357 = vmatprep.subr.bf16.mxu0 0
    %358 = vmatpush1.bf16.msra.mxu0 0
    %359 = vmatprep.subr.bf16.mxu0 0
    %360 = vmatpush1.bf16.msra.mxu0 0
    %361 = vmatprep.subr.bf16.mxu0 0
    %362 = vmatpush1.bf16.msra.mxu0 0
    %363 = vmatprep.mubr.bf16.mxu0 0
    %364 = vmatmul.mubr.bf16.gmra.mrb[0].mxu0 %v222
    %v365 = vpop.f32.mrb[0].mxu0
    %v366 = vadd.f32 %v244, %v365
    %v367 = vpop.f32.mrb[0].mxu0
    %v368 = vadd.f32 %v248, %v367
    %v369 = vpop.f32.mrb[0].mxu0
    %v370 = vadd.f32 %v244, %v369
    %v371 = vpop.f32.mrb[0].mxu0
    %v372 = vadd.f32 %v248, %v371
    %373 = vdwg.mxu0
    %v374 = vmul.f32 %v216, 0.17677669
    %v375 = vmul.f32 %v219, 0.17677669
    %v376 = vpack.c.bf16 %v375, %v374
    %377 = vst [vmem:[#allocation2] sm:$0xff] %v376
    %v378 = vpack.c.bf16 %v370, %v366
    %v379 = vpack.c.bf16 %v372, %v368
    %380 = vst [vmem:[#allocation3] sm:$0xff] %v378
    %381 = vst [vmem:[#allocation3 + $0x8] sm:$0xff] %v379
    %382 = vst [vmem:[#allocation4] sm:$0xff] %v83
    %383 = vst [vmem:[#allocation4 + $0x8] sm:$0xff] %v84
    %v384 = vld [vmem:[#allocation2] sm:$0xf]
    %v385 = vld [vmem:[#allocation3] sm:$0xf]
    %v386 = vld [vmem:[#allocation3 + $0x8] sm:$0xf]
    %vm387 = vcmask 261120
    %v389 = vsel %vm387, %v384, 0
    %v392 = vsel %vm387, %v385, 0
    %394 = vmatprep.subr.bf16.mxu0 0
    %395 = vmatpush1.bf16.xpose.msra.mxu0 %v392
    %396 = vmatprep.subr.bf16.mxu0 0
    %397 = vmatpush1.bf16.xpose.msra.mxu0 0
    %398 = vmatprep.subr.bf16.mxu0 0
    %399 = vmatpush1.bf16.xpose.msra.mxu0 0
    %400 = vmatprep.subr.bf16.mxu0 0
    %401 = vmatpush1.bf16.xpose.msra.mxu0 0
    %402 = vmatprep.subr.bf16.mxu0 0
    %403 = vmatpush1.bf16.xpose.msra.mxu0 0
    %404 = vmatprep.subr.bf16.mxu0 0
    %405 = vmatpush1.bf16.xpose.msra.mxu0 0
    %406 = vmatprep.subr.bf16.mxu0 0
    %407 = vmatpush1.bf16.xpose.msra.mxu0 0
    %408 = vmatprep.subr.bf16.mxu0 0
    %409 = vmatpush1.bf16.xpose.msra.mxu0 0
    %410 = vmatprep.subr.bf16.mxu0 0
    %411 = vmatpush1.bf16.xpose.msra.mxu0 0
    %412 = vmatprep.subr.bf16.mxu0 0
    %413 = vmatpush1.bf16.xpose.msra.mxu0 0
    %414 = vmatprep.subr.bf16.mxu0 0
    %415 = vmatpush1.bf16.xpose.msra.mxu0 0
    %416 = vmatprep.subr.bf16.mxu0 0
    %417 = vmatpush1.bf16.xpose.msra.mxu0 0
    %418 = vmatprep.subr.bf16.mxu0 0
    %419 = vmatpush1.bf16.xpose.msra.mxu0 0
    %420 = vmatprep.subr.bf16.mxu0 0
    %421 = vmatpush1.bf16.xpose.msra.mxu0 0
    %422 = vmatprep.subr.bf16.mxu0 0
    %423 = vmatpush1.bf16.xpose.msra.mxu0 0
    %424 = vmatprep.subr.bf16.mxu0 0
    %425 = vmatpush1.bf16.xpose.msra.mxu0 0
    %426 = vmatprep.mubr.bf16.mxu0 0
    %427 = vmatmul.mubr.bf16.gmra.mrb[0].mxu0 %v389
    %v428 = vpop.f32.mrb[0].mxu0
    %v429 = vadd.f32 0.0, %v428
    %v430 = vpop.f32.mrb[0].mxu0
    %v431 = vpop.f32.mrb[0].mxu0
    %v432 = vpop.f32.mrb[0].mxu0
    %433 = vdwg.mxu0
    %vm434 = vcmask 64512
    %v435 = vsel %vm434, %v429, -inf
    %436 = vmax.xlane.f32.xlu0 %v435
    %v437 = vpop.xlane.xlu0 %436
    %v438 = vsub.f32 %v429, %v437
    %v439 = vmul.f32 %v438, 1.442695
    %v440 = vpow.pop %v439
    %v441 = vsel %vm434, %v440, 0.0
    %442 = vadd.xlane.f32.xlu0 %v441
    %v443 = vpop.xlane.xlu0 %442
    %v444 = vrcp.pop %v443
    %v445 = vmul.f32 %v440, %v444
    %v446 = vpack.c.bf16 %v445, %v445
    %v448 = vsel %vm434, %v446, 0
    %vm450 = vcmask 1043456
    %v452 = vsel %vm450, %v386, 0
    %454 = vmatprep.subr.bf16.mxu0 0
    %455 = vmatpush1.bf16.msra.mxu0 %v452
    %456 = vmatprep.subr.bf16.mxu0 0
    %457 = vmatpush1.bf16.msra.mxu0 0
    %458 = vmatprep.subr.bf16.mxu0 0
    %459 = vmatpush1.bf16.msra.mxu0 0
    %460 = vmatprep.subr.bf16.mxu0 0
    %461 = vmatpush1.bf16.msra.mxu0 0
    %462 = vmatprep.subr.bf16.mxu0 0
    %463 = vmatpush1.bf16.msra.mxu0 0
    %464 = vmatprep.subr.bf16.mxu0 0
    %465 = vmatpush1.bf16.msra.mxu0 0
    %466 = vmatprep.subr.bf16.mxu0 0
    %467 = vmatpush1.bf16.msra.mxu0 0
    %468 = vmatprep.subr.bf16.mxu0 0
    %469 = vmatpush1.bf16.msra.mxu0 0
    %470 = vmatprep.subr.bf16.mxu0 0
    %471 = vmatpush1.bf16.msra.mxu0 0
    %472 = vmatprep.subr.bf16.mxu0 0
    %473 = vmatpush1.bf16.msra.mxu0 0
    %474 = vmatprep.subr.bf16.mxu0 0
    %475 = vmatpush1.bf16.msra.mxu0 0
    %476 = vmatprep.subr.bf16.mxu0 0
    %477 = vmatpush1.bf16.msra.mxu0 0
    %478 = vmatprep.subr.bf16.mxu0 0
    %479 = vmatpush1.bf16.msra.mxu0 0
    %480 = vmatprep.subr.bf16.mxu0 0
    %481 = vmatpush1.bf16.msra.mxu0 0
    %482 = vmatprep.subr.bf16.mxu0 0
    %483 = vmatpush1.bf16.msra.mxu0 0
    %484 = vmatprep.subr.bf16.mxu0 0
    %485 = vmatpush1.bf16.msra.mxu0 0
    %486 = vmatprep.mubr.bf16.mxu0 0
    %487 = vmatmul.mubr.bf16.gmra.mrb[0].mxu0 %v448
    %v488 = vpop.f32.mrb[0].mxu0
    %v489 = vadd.f32 0.0, %v488
    %v490 = vpop.f32.mrb[0].mxu0
    %v491 = vpop.f32.mrb[0].mxu0
    %v492 = vpop.f32.mrb[0].mxu0
    %493 = vdwg.mxu0
    %495 = vrot.lane.b32.xlu0 %v384, 96
    %v496 = vpop.permute.xlu0 %495
    %498 = vrot.lane.b32.xlu0 %v385, 96
    %v499 = vpop.permute.xlu0 %498
    %v501 = vsel %vm387, %v496, 0
    %v504 = vsel %vm387, %v499, 0
    %506 = vmatprep.subr.bf16.mxu0 0
    %507 = vmatpush1.bf16.xpose.msra.mxu0 %v504
    %508 = vmatprep.subr.bf16.mxu0 0
    %509 = vmatpush1.bf16.xpose.msra.mxu0 0
    %510 = vmatprep.subr.bf16.mxu0 0
    %511 = vmatpush1.bf16.xpose.msra.mxu0 0
    %512 = vmatprep.subr.bf16.mxu0 0
    %513 = vmatpush1.bf16.xpose.msra.mxu0 0
    %514 = vmatprep.subr.bf16.mxu0 0
    %515 = vmatpush1.bf16.xpose.msra.mxu0 0
    %516 = vmatprep.subr.bf16.mxu0 0
    %517 = vmatpush1.bf16.xpose.msra.mxu0 0
    %518 = vmatprep.subr.bf16.mxu0 0
    %519 = vmatpush1.bf16.xpose.msra.mxu0 0
    %520 = vmatprep.subr.bf16.mxu0 0
    %521 = vmatpush1.bf16.xpose.msra.mxu0 0
    %522 = vmatprep.subr.bf16.mxu0 0
    %523 = vmatpush1.bf16.xpose.msra.mxu0 0
    %524 = vmatprep.subr.bf16.mxu0 0
    %525 = vmatpush1.bf16.xpose.msra.mxu0 0
    %526 = vmatprep.subr.bf16.mxu0 0
    %527 = vmatpush1.bf16.xpose.msra.mxu0 0
    %528 = vmatprep.subr.bf16.mxu0 0
    %529 = vmatpush1.bf16.xpose.msra.mxu0 0
    %530 = vmatprep.subr.bf16.mxu0 0
    %531 = vmatpush1.bf16.xpose.msra.mxu0 0
    %532 = vmatprep.subr.bf16.mxu0 0
    %533 = vmatpush1.bf16.xpose.msra.mxu0 0
    %534 = vmatprep.subr.bf16.mxu0 0
    %535 = vmatpush1.bf16.xpose.msra.mxu0 0
    %536 = vmatprep.subr.bf16.mxu0 0
    %537 = vmatpush1.bf16.xpose.msra.mxu0 0
    %538 = vmatprep.mubr.bf16.mxu0 0
    %539 = vmatmul.mubr.bf16.gmra.mrb[0].mxu0 %v501
    %v540 = vpop.f32.mrb[0].mxu0
    %v541 = vadd.f32 0.0, %v540
    %v542 = vpop.f32.mrb[0].mxu0
    %v543 = vpop.f32.mrb[0].mxu0
    %v544 = vpop.f32.mrb[0].mxu0
    %545 = vdwg.mxu0
    %v546 = vsel %vm434, %v541, -inf
    %547 = vmax.xlane.f32.xlu0 %v546
    %v548 = vpop.xlane.xlu0 %547
    %v549 = vsub.f32 %v541, %v548
    %v550 = vmul.f32 %v549, 1.442695
    %v551 = vpow.pop %v550
    %v552 = vsel %vm434, %v551, 0.0
    %553 = vadd.xlane.f32.xlu0 %v552
    %v554 = vpop.xlane.xlu0 %553
    %v555 = vrcp.pop %v554
    %v556 = vmul.f32 %v551, %v555
    %v557 = vpack.c.bf16 %v556, %v556
    %559 = vrot.lane.b32.xlu0 %v386, 96
    %v560 = vpop.permute.xlu0 %559
    %v562 = vsel %vm434, %v557, 0
    %v565 = vsel %vm450, %v560, 0
    %567 = vmatprep.subr.bf16.mxu0 0
    %568 = vmatpush1.bf16.msra.mxu0 %v565
    %569 = vmatprep.subr.bf16.mxu0 0
    %570 = vmatpush1.bf16.msra.mxu0 0
    %571 = vmatprep.subr.bf16.mxu0 0
    %572 = vmatpush1.bf16.msra.mxu0 0
    %573 = vmatprep.subr.bf16.mxu0 0
    %574 = vmatpush1.bf16.msra.mxu0 0
    %575 = vmatprep.subr.bf16.mxu0 0
    %576 = vmatpush1.bf16.msra.mxu0 0
    %577 = vmatprep.subr.bf16.mxu0 0
    %578 = vmatpush1.bf16.msra.mxu0 0
    %579 = vmatprep.subr.bf16.mxu0 0
    %580 = vmatpush1.bf16.msra.mxu0 0
    %581 = vmatprep.subr.bf16.mxu0 0
    %582 = vmatpush1.bf16.msra.mxu0 0
    %583 = vmatprep.subr.bf16.mxu0 0
    %584 = vmatpush1.bf16.msra.mxu0 0
    %585 = vmatprep.subr.bf16.mxu0 0
    %586 = vmatpush1.bf16.msra.mxu0 0
    %587 = vmatprep.subr.bf16.mxu0 0
    %588 = vmatpush1.bf16.msra.mxu0 0
    %589 = vmatprep.subr.bf16.mxu0 0
    %590 = vmatpush1.bf16.msra.mxu0 0
    %591 = vmatprep.subr.bf16.mxu0 0
    %592 = vmatpush1.bf16.msra.mxu0 0
    %593 = vmatprep.subr.bf16.mxu0 0
    %594 = vmatpush1.bf16.msra.mxu0 0
    %595 = vmatprep.subr.bf16.mxu0 0
    %596 = vmatpush1.bf16.msra.mxu0 0
    %597 = vmatprep.subr.bf16.mxu0 0
    %598 = vmatpush1.bf16.msra.mxu0 0
    %599 = vmatprep.mubr.bf16.mxu0 0
    %600 = vmatmul.mubr.bf16.gmra.mrb[0].mxu0 %v562
    %v601 = vpop.f32.mrb[0].mxu0
    %v602 = vadd.f32 0.0, %v601
    %v603 = vpop.f32.mrb[0].mxu0
    %v604 = vpop.f32.mrb[0].mxu0
    %v605 = vpop.f32.mrb[0].mxu0
    %606 = vdwg.mxu0
    %607 = vrot.lane.b32.xlu0 %v384, 64
    %v608 = vpop.permute.xlu0 %607
    %609 = vrot.lane.b32.xlu0 %v385, 64
    %v610 = vpop.permute.xlu0 %609
    %v612 = vsel %vm387, %v608, 0
    %v615 = vsel %vm387, %v610, 0
    %617 = vmatprep.subr.bf16.mxu0 0
    %618 = vmatpush1.bf16.xpose.msra.mxu0 %v615
    %619 = vmatprep.subr.bf16.mxu0 0
    %620 = vmatpush1.bf16.xpose.msra.mxu0 0
    %621 = vmatprep.subr.bf16.mxu0 0
    %622 = vmatpush1.bf16.xpose.msra.mxu0 0
    %623 = vmatprep.subr.bf16.mxu0 0
    %624 = vmatpush1.bf16.xpose.msra.mxu0 0
    %625 = vmatprep.subr.bf16.mxu0 0
    %626 = vmatpush1.bf16.xpose.msra.mxu0 0
    %627 = vmatprep.subr.bf16.mxu0 0
    %628 = vmatpush1.bf16.xpose.msra.mxu0 0
    %629 = vmatprep.subr.bf16.mxu0 0
    %630 = vmatpush1.bf16.xpose.msra.mxu0 0
    %631 = vmatprep.subr.bf16.mxu0 0
    %632 = vmatpush1.bf16.xpose.msra.mxu0 0
    %633 = vmatprep.subr.bf16.mxu0 0
    %634 = vmatpush1.bf16.xpose.msra.mxu0 0
    %635 = vmatprep.subr.bf16.mxu0 0
    %636 = vmatpush1.bf16.xpose.msra.mxu0 0
    %637 = vmatprep.subr.bf16.mxu0 0
    %638 = vmatpush1.bf16.xpose.msra.mxu0 0
    %639 = vmatprep.subr.bf16.mxu0 0
    %640 = vmatpush1.bf16.xpose.msra.mxu0 0
    %641 = vmatprep.subr.bf16.mxu0 0
    %642 = vmatpush1.bf16.xpose.msra.mxu0 0
    %643 = vmatprep.subr.bf16.mxu0 0
    %644 = vmatpush1.bf16.xpose.msra.mxu0 0
    %645 = vmatprep.subr.bf16.mxu0 0
    %646 = vmatpush1.bf16.xpose.msra.mxu0 0
    %647 = vmatprep.subr.bf16.mxu0 0
    %648 = vmatpush1.bf16.xpose.msra.mxu0 0
    %649 = vmatprep.mubr.bf16.mxu0 0
    %650 = vmatmul.mubr.bf16.gmra.mrb[0].mxu0 %v612
    %v651 = vpop.f32.mrb[0].mxu0
    %v652 = vadd.f32 0.0, %v651
    %v653 = vpop.f32.mrb[0].mxu0
    %v654 = vpop.f32.mrb[0].mxu0
    %v655 = vpop.f32.mrb[0].mxu0
    %656 = vdwg.mxu0
    %v657 = vsel %vm434, %v652, -inf
    %658 = vmax.xlane.f32.xlu0 %v657
    %v659 = vpop.xlane.xlu0 %658
    %v660 = vsub.f32 %v652, %v659
    %v661 = vmul.f32 %v660, 1.442695
    %v662 = vpow.pop %v661
    %v663 = vsel %vm434, %v662, 0.0
    %664 = vadd.xlane.f32.xlu0 %v663
    %v665 = vpop.xlane.xlu0 %664
    %v666 = vrcp.pop %v665
    %v667 = vmul.f32 %v662, %v666
    %v668 = vpack.c.bf16 %v667, %v667
    %669 = vrot.lane.b32.xlu0 %v386, 64
    %v670 = vpop.permute.xlu0 %669
    %v672 = vsel %vm434, %v668, 0
    %v675 = vsel %vm450, %v670, 0
    %677 = vmatprep.subr.bf16.mxu0 0
    %678 = vmatpush1.bf16.msra.mxu0 %v675
    %679 = vmatprep.subr.bf16.mxu0 0
    %680 = vmatpush1.bf16.msra.mxu0 0
    %681 = vmatprep.subr.bf16.mxu0 0
    %682 = vmatpush1.bf16.msra.mxu0 0
    %683 = vmatprep.subr.bf16.mxu0 0
    %684 = vmatpush1.bf16.msra.mxu0 0
    %685 = vmatprep.subr.bf16.mxu0 0
    %686 = vmatpush1.bf16.msra.mxu0 0
    %687 = vmatprep.subr.bf16.mxu0 0
    %688 = vmatpush1.bf16.msra.mxu0 0
    %689 = vmatprep.subr.bf16.mxu0 0
    %690 = vmatpush1.bf16.msra.mxu0 0
    %691 = vmatprep.subr.bf16.mxu0 0
    %692 = vmatpush1.bf16.msra.mxu0 0
    %693 = vmatprep.subr.bf16.mxu0 0
    %694 = vmatpush1.bf16.msra.mxu0 0
    %695 = vmatprep.subr.bf16.mxu0 0
    %696 = vmatpush1.bf16.msra.mxu0 0
    %697 = vmatprep.subr.bf16.mxu0 0
    %698 = vmatpush1.bf16.msra.mxu0 0
    %699 = vmatprep.subr.bf16.mxu0 0
    %700 = vmatpush1.bf16.msra.mxu0 0
    %701 = vmatprep.subr.bf16.mxu0 0
    %702 = vmatpush1.bf16.msra.mxu0 0
    %703 = vmatprep.subr.bf16.mxu0 0
    %704 = vmatpush1.bf16.msra.mxu0 0
    %705 = vmatprep.subr.bf16.mxu0 0
    %706 = vmatpush1.bf16.msra.mxu0 0
    %707 = vmatprep.subr.bf16.mxu0 0
    %708 = vmatpush1.bf16.msra.mxu0 0
    %709 = vmatprep.mubr.bf16.mxu0 0
    %710 = vmatmul.mubr.bf16.gmra.mrb[0].mxu0 %v672
    %v711 = vpop.f32.mrb[0].mxu0
    %v712 = vadd.f32 0.0, %v711
    %v713 = vpop.f32.mrb[0].mxu0
    %v714 = vpop.f32.mrb[0].mxu0
    %v715 = vpop.f32.mrb[0].mxu0
    %716 = vdwg.mxu0
    %717 = vrot.lane.b32.xlu0 %v384, 32
    %v718 = vpop.permute.xlu0 %717
    %719 = vrot.lane.b32.xlu0 %v385, 32
    %v720 = vpop.permute.xlu0 %719
    %v722 = vsel %vm387, %v718, 0
    %v725 = vsel %vm387, %v720, 0
    %727 = vmatprep.subr.bf16.mxu0 0
    %728 = vmatpush1.bf16.xpose.msra.mxu0 %v725
    %729 = vmatprep.subr.bf16.mxu0 0
    %730 = vmatpush1.bf16.xpose.msra.mxu0 0
    %731 = vmatprep.subr.bf16.mxu0 0
    %732 = vmatpush1.bf16.xpose.msra.mxu0 0
    %733 = vmatprep.subr.bf16.mxu0 0
    %734 = vmatpush1.bf16.xpose.msra.mxu0 0
    %735 = vmatprep.subr.bf16.mxu0 0
    %736 = vmatpush1.bf16.xpose.msra.mxu0 0
    %737 = vmatprep.subr.bf16.mxu0 0
    %738 = vmatpush1.bf16.xpose.msra.mxu0 0
    %739 = vmatprep.subr.bf16.mxu0 0
    %740 = vmatpush1.bf16.xpose.msra.mxu0 0
    %741 = vmatprep.subr.bf16.mxu0 0
    %742 = vmatpush1.bf16.xpose.msra.mxu0 0
    %743 = vmatprep.subr.bf16.mxu0 0
    %744 = vmatpush1.bf16.xpose.msra.mxu0 0
    %745 = vmatprep.subr.bf16.mxu0 0
    %746 = vmatpush1.bf16.xpose.msra.mxu0 0
    %747 = vmatprep.subr.bf16.mxu0 0
    %748 = vmatpush1.bf16.xpose.msra.mxu0 0
    %749 = vmatprep.subr.bf16.mxu0 0
    %750 = vmatpush1.bf16.xpose.msra.mxu0 0
    %751 = vmatprep.subr.bf16.mxu0 0
    %752 = vmatpush1.bf16.xpose.msra.mxu0 0
    %753 = vmatprep.subr.bf16.mxu0 0
    %754 = vmatpush1.bf16.xpose.msra.mxu0 0
    %755 = vmatprep.subr.bf16.mxu0 0
    %756 = vmatpush1.bf16.xpose.msra.mxu0 0
    %757 = vmatprep.subr.bf16.mxu0 0
    %758 = vmatpush1.bf16.xpose.msra.mxu0 0
    %759 = vmatprep.mubr.bf16.mxu0 0
    %760 = vmatmul.mubr.bf16.gmra.mrb[0].mxu0 %v722
    %v761 = vpop.f32.mrb[0].mxu0
    %v762 = vadd.f32 0.0, %v761
    %v763 = vpop.f32.mrb[0].mxu0
    %v764 = vpop.f32.mrb[0].mxu0
    %v765 = vpop.f32.mrb[0].mxu0
    %766 = vdwg.mxu0
    %v767 = vsel %vm434, %v762, -inf
    %768 = vmax.xlane.f32.xlu0 %v767
    %v769 = vpop.xlane.xlu0 %768
    %v770 = vsub.f32 %v762, %v769
    %v771 = vmul.f32 %v770, 1.442695
    %v772 = vpow.pop %v771
    %v773 = vsel %vm434, %v772, 0.0
    %774 = vadd.xlane.f32.xlu0 %v773
    %v775 = vpop.xlane.xlu0 %774
    %v776 = vrcp.pop %v775
    %v777 = vmul.f32 %v772, %v776
    %v778 = vpack.c.bf16 %v777, %v777
    %779 = vrot.lane.b32.xlu0 %v386, 32
    %v780 = vpop.permute.xlu0 %779
    %v782 = vsel %vm434, %v778, 0
    %v785 = vsel %vm450, %v780, 0
    %787 = vmatprep.subr.bf16.mxu0 0
    %788 = vmatpush1.bf16.msra.mxu0 %v785
    %789 = vmatprep.subr.bf16.mxu0 0
    %790 = vmatpush1.bf16.msra.mxu0 0
    %791 = vmatprep.subr.bf16.mxu0 0
    %792 = vmatpush1.bf16.msra.mxu0 0
    %793 = vmatprep.subr.bf16.mxu0 0
    %794 = vmatpush1.bf16.msra.mxu0 0
    %795 = vmatprep.subr.bf16.mxu0 0
    %796 = vmatpush1.bf16.msra.mxu0 0
    %797 = vmatprep.subr.bf16.mxu0 0
    %798 = vmatpush1.bf16.msra.mxu0 0
    %799 = vmatprep.subr.bf16.mxu0 0
    %800 = vmatpush1.bf16.msra.mxu0 0
    %801 = vmatprep.subr.bf16.mxu0 0
    %802 = vmatpush1.bf16.msra.mxu0 0
    %803 = vmatprep.subr.bf16.mxu0 0
    %804 = vmatpush1.bf16.msra.mxu0 0
    %805 = vmatprep.subr.bf16.mxu0 0
    %806 = vmatpush1.bf16.msra.mxu0 0
    %807 = vmatprep.subr.bf16.mxu0 0
    %808 = vmatpush1.bf16.msra.mxu0 0
    %809 = vmatprep.subr.bf16.mxu0 0
    %810 = vmatpush1.bf16.msra.mxu0 0
    %811 = vmatprep.subr.bf16.mxu0 0
    %812 = vmatpush1.bf16.msra.mxu0 0
    %813 = vmatprep.subr.bf16.mxu0 0
    %814 = vmatpush1.bf16.msra.mxu0 0
    %815 = vmatprep.subr.bf16.mxu0 0
    %816 = vmatpush1.bf16.msra.mxu0 0
    %817 = vmatprep.subr.bf16.mxu0 0
    %818 = vmatpush1.bf16.msra.mxu0 0
    %819 = vmatprep.mubr.bf16.mxu0 0
    %820 = vmatmul.mubr.bf16.gmra.mrb[0].mxu0 %v782
    %v821 = vpop.f32.mrb[0].mxu0
    %v822 = vadd.f32 0.0, %v821
    %v823 = vpop.f32.mrb[0].mxu0
    %v824 = vpop.f32.mrb[0].mxu0
    %v825 = vpop.f32.mrb[0].mxu0
    %826 = vdwg.mxu0
    %828 = vrot.lane.b32.xlu0 %v602, 32
    %v829 = vpop.permute.xlu0 %828
    %832 = vrot.lane.b32.xlu0 %v712, 64
    %v833 = vpop.permute.xlu0 %832
    %836 = vrot.lane.b32.xlu0 %v822, 96
    %v837 = vpop.permute.xlu0 %836
    %v839 = vsel %vm387, %v489, %v829
    %vm840 = vcmask 523264
    %v841 = vsel %vm840, %v839, %v833
    %vm842 = vcmask 785408
    %v843 = vsel %vm842, %v841, %v837
    %v844 = vpack.c.bf16 %v843, %v843
    %v845 = vld [vmem:[#allocation10 + $0xc] sm:$0xf]
    %v846 = vld [vmem:[#allocation10 + $0x1c] sm:$0xf]
    %v847 = vld [vmem:[#allocation10 + $0x2c] sm:$0xf]
    %v848 = vld [vmem:[#allocation10 + $0x3c] sm:$0xf]
    %v849 = vld [vmem:[#allocation10 + $0x4c] sm:$0xf]
    %v850 = vld [vmem:[#allocation10 + $0x5c] sm:$0xf]
    %v851 = vld [vmem:[#allocation10 + $0x6c] sm:$0xf]
    %v852 = vld [vmem:[#allocation10 + $0x7c] sm:$0xf]
    %v853 = vld [vmem:[#allocation10 + $0x8c] sm:$0xf]
    %v854 = vld [vmem:[#allocation10 + $0x9c] sm:$0xf]
    %v855 = vld [vmem:[#allocation10 + $0xac] sm:$0xf]
    %v856 = vld [vmem:[#allocation10 + $0xbc] sm:$0xf]
    %v857 = vld [vmem:[#allocation10 + $0xcc] sm:$0xf]
    %v858 = vld [vmem:[#allocation10 + $0xdc] sm:$0xf]
    %v859 = vld [vmem:[#allocation10 + $0xec] sm:$0xf]
    %v860 = vld [vmem:[#allocation10 + $0xfc] sm:$0xf]
    %v861 = vld [vmem:[%s3 + $0x3] sm:$0x1]
    %v863 = vlaneseq
    %v864 = vshrl.u32 %v863, 7
    %v865 = vsub.s32 0, %v864
    %v866 = vrot.slane %v861, %v865
    %v884 = vunpack.c.l.b16 %v845
    %v885 = vunpack.c.l.b16 %v846
    %v886 = vunpack.c.l.b16 %v847
    %v887 = vunpack.c.l.b16 %v848
    %v888 = vunpack.c.l.b16 %v849
    %v889 = vunpack.c.l.b16 %v850
    %v890 = vunpack.c.l.b16 %v851
    %v891 = vunpack.c.l.b16 %v852
    %v892 = vunpack.c.l.b16 %v853
    %v893 = vunpack.c.l.b16 %v854
    %v894 = vunpack.c.l.b16 %v855
    %v895 = vunpack.c.l.b16 %v856
    %v896 = vunpack.c.l.b16 %v857
    %v897 = vunpack.c.l.b16 %v858
    %v898 = vunpack.c.l.b16 %v859
    %v899 = vunpack.c.l.b16 %v860
    %v900 = vpack.c.b16 %v885, %v884
    %v901 = vpack.c.b16 %v887, %v886
    %v902 = vpack.c.b16 %v889, %v888
    %v903 = vpack.c.b16 %v891, %v890
    %v904 = vpack.c.b16 %v893, %v892
    %v905 = vpack.c.b16 %v895, %v894
    %v906 = vpack.c.b16 %v897, %v896
    %v907 = vpack.c.b16 %v899, %v898
    %916 = vmatprep.subr.bf16.mxu0 0
    %917 = vmatpush1.bf16.msra.mxu0 %v900
    %918 = vmatprep.subr.bf16.mxu0 0
    %919 = vmatpush1.bf16.msra.mxu0 %v901
    %920 = vmatprep.subr.bf16.mxu0 0
    %921 = vmatpush1.bf16.msra.mxu0 %v902
    %922 = vmatprep.subr.bf16.mxu0 0
    %923 = vmatpush1.bf16.msra.mxu0 %v903
    %924 = vmatprep.subr.bf16.mxu0 0
    %925 = vmatpush1.bf16.msra.mxu0 %v904
    %926 = vmatprep.subr.bf16.mxu0 0
    %927 = vmatpush1.bf16.msra.mxu0 %v905
    %928 = vmatprep.subr.bf16.mxu0 0
    %929 = vmatpush1.bf16.msra.mxu0 %v906
    %930 = vmatprep.subr.bf16.mxu0 0
    %931 = vmatpush1.bf16.msra.mxu0 %v907
    %932 = vmatprep.subr.bf16.mxu0 0
    %933 = vmatpush1.bf16.msra.mxu0 0
    %934 = vmatprep.subr.bf16.mxu0 0
    %935 = vmatpush1.bf16.msra.mxu0 0
    %936 = vmatprep.subr.bf16.mxu0 0
    %937 = vmatpush1.bf16.msra.mxu0 0
    %938 = vmatprep.subr.bf16.mxu0 0
    %939 = vmatpush1.bf16.msra.mxu0 0
    %940 = vmatprep.subr.bf16.mxu0 0
    %941 = vmatpush1.bf16.msra.mxu0 0
    %942 = vmatprep.subr.bf16.mxu0 0
    %943 = vmatpush1.bf16.msra.mxu0 0
    %944 = vmatprep.subr.bf16.mxu0 0
    %945 = vmatpush1.bf16.msra.mxu0 0
    %946 = vmatprep.subr.bf16.mxu0 0
    %947 = vmatpush1.bf16.msra.mxu0 0
    %948 = vmatprep.mubr.bf16.mxu0 0
    %949 = vmatmul.mubr.bf16.gmra.mrb[0].mxu0 %v844
    %v950 = vpop.f32.mrb[0].mxu0
    %v951 = vadd.f32 %v866, %v950
    %v952 = vpop.f32.mrb[0].mxu0
    %v953 = vpop.f32.mrb[0].mxu0
    %v954 = vpop.f32.mrb[0].mxu0
    %955 = vdwg.mxu0
    %v956 = vld [vmem:[#allocation4] sm:$0xff]
    %v957 = vadd.f32 %v951, %v956
    %v959 = vcombine.high %v957, %v957
    %v961 = vunpack.c.l.s4 1966171168
    %v962 = vunpack.c.0.s8 %v961
    %v963 = vlaneseq
    %v964 = vshrl.u32 %v963, 7
    %v965 = vsub.s32 %v962, %v964
    %v966 = vrot.slane %v957, %v965
    %v968 = vunpack.c.l.s4 1966171168
    %v969 = vunpack.c.0.s8 %v968
    %v970 = vlaneseq
    %v971 = vshrl.u32 %v970, 7
    %v972 = vsub.s32 %v969, %v971
    %v973 = vrot.slane %v959, %v972
    %v974 = vcombine.high %v966, %v966
    %v975 = vcombine.high %v973, %v973
    %v977 = vunpack.c.l.s4 1966171168
    %v978 = vunpack.c.0.s8 %v977
    %v979 = vlaneseq
    %v980 = vshrl.u32 %v979, 7
    %v981 = vsub.s32 %v978, %v980
    %v982 = vrot.slane %v966, %v981
    %v984 = vunpack.c.l.s4 1966171168
    %v985 = vunpack.c.0.s8 %v984
    %v986 = vlaneseq
    %v987 = vshrl.u32 %v986, 7
    %v988 = vsub.s32 %v985, %v987
    %v989 = vrot.slane %v973, %v988
    %v991 = vunpack.c.l.s4 1966171168
    %v992 = vunpack.c.0.s8 %v991
    %v993 = vlaneseq
    %v994 = vshrl.u32 %v993, 7
    %v995 = vsub.s32 %v992, %v994
    %v996 = vrot.slane %v974, %v995
    %v998 = vunpack.c.l.s4 1966171168
    %v999 = vunpack.c.0.s8 %v998
    %v1000 = vlaneseq
    %v1001 = vshrl.u32 %v1000, 7
    %v1002 = vsub.s32 %v999, %v1001
    %v1003 = vrot.slane %v975, %v1002
    %v1004 = vcombine.high %v982, %v982
    %v1005 = vcombine.high %v989, %v989
    %v1006 = vcombine.high %v996, %v996
    %v1007 = vcombine.high %v1003, %v1003
    %1016 = vst [vmem:[#allocation11] sm:$0x1] %v982
    %1017 = vst [vmem:[#allocation11 + $0x2] sm:$0x1] %v996
    %1018 = vst [vmem:[#allocation11 + $0x4] sm:$0x1] %v1004
    %1019 = vst [vmem:[#allocation11 + $0x6] sm:$0x1] %v1006
    %1020 = vst [vmem:[#allocation11 + $0x8] sm:$0x1] %v989
    %1021 = vst [vmem:[#allocation11 + $0xa] sm:$0x1] %v1003
    %1022 = vst [vmem:[#allocation11 + $0xc] sm:$0x1] %v1005
    %1023 = vst [vmem:[#allocation11 + $0xe] sm:$0x1] %v1007
    %v1024 = vld [vmem:[#allocation2] sm:$0xf0]
    %v1025 = vld [vmem:[#allocation3] sm:$0xf0]
    %v1026 = vld [vmem:[#allocation3 + $0x8] sm:$0xf0]
    %v1028 = vrot.slane %v1024, 4
    %v1030 = vrot.slane %v1025, 4
    %v1032 = vsel %vm387, %v1028, 0
    %v1035 = vsel %vm387, %v1030, 0
    %1037 = vmatprep.subr.bf16.mxu0 0
    %1038 = vmatpush1.bf16.xpose.msra.mxu0 %v1035
    %1039 = vmatprep.subr.bf16.mxu0 0
    %1040 = vmatpush1.bf16.xpose.msra.mxu0 0
    %1041 = vmatprep.subr.bf16.mxu0 0
    %1042 = vmatpush1.bf16.xpose.msra.mxu0 0
    %1043 = vmatprep.subr.bf16.mxu0 0
    %1044 = vmatpush1.bf16.xpose.msra.mxu0 0
    %1045 = vmatprep.subr.bf16.mxu0 0
    %1046 = vmatpush1.bf16.xpose.msra.mxu0 0
    %1047 = vmatprep.subr.bf16.mxu0 0
    %1048 = vmatpush1.bf16.xpose.msra.mxu0 0
    %1049 = vmatprep.subr.bf16.mxu0 0
    %1050 = vmatpush1.bf16.xpose.msra.mxu0 0
    %1051 = vmatprep.subr.bf16.mxu0 0
    %1052 = vmatpush1.bf16.xpose.msra.mxu0 0
    %1053 = vmatprep.subr.bf16.mxu0 0
    %1054 = vmatpush1.bf16.xpose.msra.mxu0 0
    %1055 = vmatprep.subr.bf16.mxu0 0
    %1056 = vmatpush1.bf16.xpose.msra.mxu0 0
    %1057 = vmatprep.subr.bf16.mxu0 0
    %1058 = vmatpush1.bf16.xpose.msra.mxu0 0
    %1059 = vmatprep.subr.bf16.mxu0 0
    %1060 = vmatpush1.bf16.xpose.msra.mxu0 0
    %1061 = vmatprep.subr.bf16.mxu0 0
    %1062 = vmatpush1.bf16.xpose.msra.mxu0 0
    %1063 = vmatprep.subr.bf16.mxu0 0
    %1064 = vmatpush1.bf16.xpose.msra.mxu0 0
    %1065 = vmatprep.subr.bf16.mxu0 0
    %1066 = vmatpush1.bf16.xpose.msra.mxu0 0
    %1067 = vmatprep.subr.bf16.mxu0 0
    %1068 = vmatpush1.bf16.xpose.msra.mxu0 0
    %1069 = vmatprep.mubr.bf16.mxu0 0
    %1070 = vmatmul.mubr.bf16.gmra.mrb[0].mxu0 %v1032
    %v1071 = vpop.f32.mrb[0].mxu0
    %v1072 = vadd.f32 0.0, %v1071
    %v1073 = vpop.f32.mrb[0].mxu0
    %v1074 = vpop.f32.mrb[0].mxu0
    %v1075 = vpop.f32.mrb[0].mxu0
    %1076 = vdwg.mxu0
    %v1077 = vsel %vm434, %v1072, -inf
    %1078 = vmax.xlane.f32.xlu0 %v1077
    %v1079 = vpop.xlane.xlu0 %1078
    %v1080 = vsub.f32 %v1072, %v1079
    %v1081 = vmul.f32 %v1080, 1.442695
    %v1082 = vpow.pop %v1081
    %v1083 = vsel %vm434, %v1082, 0.0
    %1084 = vadd.xlane.f32.xlu0 %v1083
    %v1085 = vpop.xlane.xlu0 %1084
    %v1086 = vrcp.pop %v1085
    %v1087 = vmul.f32 %v1082, %v1086
    %v1088 = vpack.c.bf16 %v1087, %v1087
    %v1090 = vrot.slane %v1026, 4
    %v1092 = vsel %vm434, %v1088, 0
    %v1095 = vsel %vm450, %v1090, 0
    %1097 = vmatprep.subr.bf16.mxu0 0
    %1098 = vmatpush1.bf16.msra.mxu0 %v1095
    %1099 = vmatprep.subr.bf16.mxu0 0
    %1100 = vmatpush1.bf16.msra.mxu0 0
    %1101 = vmatprep.subr.bf16.mxu0 0
    %1102 = vmatpush1.bf16.msra.mxu0 0
    %1103 = vmatprep.subr.bf16.mxu0 0
    %1104 = vmatpush1.bf16.msra.mxu0 0
    %1105 = vmatprep.subr.bf16.mxu0 0
    %1106 = vmatpush1.bf16.msra.mxu0 0
    %1107 = vmatprep.subr.bf16.mxu0 0
    %1108 = vmatpush1.bf16.msra.mxu0 0
    %1109 = vmatprep.subr.bf16.mxu0 0
    %1110 = vmatpush1.bf16.msra.mxu0 0
    %1111 = vmatprep.subr.bf16.mxu0 0
    %1112 = vmatpush1.bf16.msra.mxu0 0
    %1113 = vmatprep.subr.bf16.mxu0 0
    %1114 = vmatpush1.bf16.msra.mxu0 0
    %1115 = vmatprep.subr.bf16.mxu0 0
    %1116 = vmatpush1.bf16.msra.mxu0 0
    %1117 = vmatprep.subr.bf16.mxu0 0
    %1118 = vmatpush1.bf16.msra.mxu0 0
    %1119 = vmatprep.subr.bf16.mxu0 0
    %1120 = vmatpush1.bf16.msra.mxu0 0
    %1121 = vmatprep.subr.bf16.mxu0 0
    %1122 = vmatpush1.bf16.msra.mxu0 0
    %1123 = vmatprep.subr.bf16.mxu0 0
    %1124 = vmatpush1.bf16.msra.mxu0 0
    %1125 = vmatprep.subr.bf16.mxu0 0
    %1126 = vmatpush1.bf16.msra.mxu0 0
    %1127 = vmatprep.subr.bf16.mxu0 0
    %1128 = vmatpush1.bf16.msra.mxu0 0
    %1129 = vmatprep.mubr.bf16.mxu0 0
    %1130 = vmatmul.mubr.bf16.gmra.mrb[0].mxu0 %v1092
    %v1131 = vpop.f32.mrb[0].mxu0
    %v1132 = vadd.f32 0.0, %v1131
    %v1133 = vpop.f32.mrb[0].mxu0
    %v1134 = vpop.f32.mrb[0].mxu0
    %v1135 = vpop.f32.mrb[0].mxu0
    %1136 = vdwg.mxu0
    %1137 = vrot.lane.b32.xlu0 %v1028, 96
    %v1138 = vpop.permute.xlu0 %1137
    %1139 = vrot.lane.b32.xlu0 %v1030, 96
    %v1140 = vpop.permute.xlu0 %1139
    %v1142 = vsel %vm387, %v1138, 0
    %v1145 = vsel %vm387, %v1140, 0
    %1147 = vmatprep.subr.bf16.mxu0 0
    %1148 = vmatpush1.bf16.xpose.msra.mxu0 %v1145
    %1149 = vmatprep.subr.bf16.mxu0 0
    %1150 = vmatpush1.bf16.xpose.msra.mxu0 0
    %1151 = vmatprep.subr.bf16.mxu0 0
    %1152 = vmatpush1.bf16.xpose.msra.mxu0 0
    %1153 = vmatprep.subr.bf16.mxu0 0
    %1154 = vmatpush1.bf16.xpose.msra.mxu0 0
    %1155 = vmatprep.subr.bf16.mxu0 0
    %1156 = vmatpush1.bf16.xpose.msra.mxu0 0
    %1157 = vmatprep.subr.bf16.mxu0 0
    %1158 = vmatpush1.bf16.xpose.msra.mxu0 0
    %1159 = vmatprep.subr.bf16.mxu0 0
    %1160 = vmatpush1.bf16.xpose.msra.mxu0 0
    %1161 = vmatprep.subr.bf16.mxu0 0
    %1162 = vmatpush1.bf16.xpose.msra.mxu0 0
    %1163 = vmatprep.subr.bf16.mxu0 0
    %1164 = vmatpush1.bf16.xpose.msra.mxu0 0
    %1165 = vmatprep.subr.bf16.mxu0 0
    %1166 = vmatpush1.bf16.xpose.msra.mxu0 0
    %1167 = vmatprep.subr.bf16.mxu0 0
    %1168 = vmatpush1.bf16.xpose.msra.mxu0 0
    %1169 = vmatprep.subr.bf16.mxu0 0
    %1170 = vmatpush1.bf16.xpose.msra.mxu0 0
    %1171 = vmatprep.subr.bf16.mxu0 0
    %1172 = vmatpush1.bf16.xpose.msra.mxu0 0
    %1173 = vmatprep.subr.bf16.mxu0 0
    %1174 = vmatpush1.bf16.xpose.msra.mxu0 0
    %1175 = vmatprep.subr.bf16.mxu0 0
    %1176 = vmatpush1.bf16.xpose.msra.mxu0 0
    %1177 = vmatprep.subr.bf16.mxu0 0
    %1178 = vmatpush1.bf16.xpose.msra.mxu0 0
    %1179 = vmatprep.mubr.bf16.mxu0 0
    %1180 = vmatmul.mubr.bf16.gmra.mrb[0].mxu0 %v1142
    %v1181 = vpop.f32.mrb[0].mxu0
    %v1182 = vadd.f32 0.0, %v1181
    %v1183 = vpop.f32.mrb[0].mxu0
    %v1184 = vpop.f32.mrb[0].mxu0
    %v1185 = vpop.f32.mrb[0].mxu0
    %1186 = vdwg.mxu0
    %v1187 = vsel %vm434, %v1182, -inf
    %1188 = vmax.xlane.f32.xlu0 %v1187
    %v1189 = vpop.xlane.xlu0 %1188
    %v1190 = vsub.f32 %v1182, %v1189
    %v1191 = vmul.f32 %v1190, 1.442695
    %v1192 = vpow.pop %v1191
    %v1193 = vsel %vm434, %v1192, 0.0
    %1194 = vadd.xlane.f32.xlu0 %v1193
    %v1195 = vpop.xlane.xlu0 %1194
    %v1196 = vrcp.pop %v1195
    %v1197 = vmul.f32 %v1192, %v1196
    %v1198 = vpack.c.bf16 %v1197, %v1197
    %1199 = vrot.lane.b32.xlu0 %v1090, 96
    %v1200 = vpop.permute.xlu0 %1199
    %v1202 = vsel %vm434, %v1198, 0
    %v1205 = vsel %vm450, %v1200, 0
    %1207 = vmatprep.subr.bf16.mxu0 0
    %1208 = vmatpush1.bf16.msra.mxu0 %v1205
    %1209 = vmatprep.subr.bf16.mxu0 0
    %1210 = vmatpush1.bf16.msra.mxu0 0
    %1211 = vmatprep.subr.bf16.mxu0 0
    %1212 = vmatpush1.bf16.msra.mxu0 0
    %1213 = vmatprep.subr.bf16.mxu0 0
    %1214 = vmatpush1.bf16.msra.mxu0 0
    %1215 = vmatprep.subr.bf16.mxu0 0
    %1216 = vmatpush1.bf16.msra.mxu0 0
    %1217 = vmatprep.subr.bf16.mxu0 0
    %1218 = vmatpush1.bf16.msra.mxu0 0
    %1219 = vmatprep.subr.bf16.mxu0 0
    %1220 = vmatpush1.bf16.msra.mxu0 0
    %1221 = vmatprep.subr.bf16.mxu0 0
    %1222 = vmatpush1.bf16.msra.mxu0 0
    %1223 = vmatprep.subr.bf16.mxu0 0
    %1224 = vmatpush1.bf16.msra.mxu0 0
    %1225 = vmatprep.subr.bf16.mxu0 0
    %1226 = vmatpush1.bf16.msra.mxu0 0
    %1227 = vmatprep.subr.bf16.mxu0 0
    %1228 = vmatpush1.bf16.msra.mxu0 0
    %1229 = vmatprep.subr.bf16.mxu0 0
    %1230 = vmatpush1.bf16.msra.mxu0 0
    %1231 = vmatprep.subr.bf16.mxu0 0
    %1232 = vmatpush1.bf16.msra.mxu0 0
    %1233 = vmatprep.subr.bf16.mxu0 0
    %1234 = vmatpush1.bf16.msra.mxu0 0
    %1235 = vmatprep.subr.bf16.mxu0 0
    %1236 = vmatpush1.bf16.msra.mxu0 0
    %1237 = vmatprep.subr.bf16.mxu0 0
    %1238 = vmatpush1.bf16.msra.mxu0 0
    %1239 = vmatprep.mubr.bf16.mxu0 0
    %1240 = vmatmul.mubr.bf16.gmra.mrb[0].mxu0 %v1202
    %v1241 = vpop.f32.mrb[0].mxu0
    %v1242 = vadd.f32 0.0, %v1241
    %v1243 = vpop.f32.mrb[0].mxu0
    %v1244 = vpop.f32.mrb[0].mxu0
    %v1245 = vpop.f32.mrb[0].mxu0
    %1246 = vdwg.mxu0
    %1247 = vrot.lane.b32.xlu0 %v1028, 64
    %v1248 = vpop.permute.xlu0 %1247
    %1249 = vrot.lane.b32.xlu0 %v1030, 64
    %v1250 = vpop.permute.xlu0 %1249
    %v1252 = vsel %vm387, %v1248, 0
    %v1255 = vsel %vm387, %v1250, 0
    %1257 = vmatprep.subr.bf16.mxu0 0
    %1258 = vmatpush1.bf16.xpose.msra.mxu0 %v1255
    %1259 = vmatprep.subr.bf16.mxu0 0
    %1260 = vmatpush1.bf16.xpose.msra.mxu0 0
    %1261 = vmatprep.subr.bf16.mxu0 0
    %1262 = vmatpush1.bf16.xpose.msra.mxu0 0
    %1263 = vmatprep.subr.bf16.mxu0 0
    %1264 = vmatpush1.bf16.xpose.msra.mxu0 0
    %1265 = vmatprep.subr.bf16.mxu0 0
    %1266 = vmatpush1.bf16.xpose.msra.mxu0 0
    %1267 = vmatprep.subr.bf16.mxu0 0
    %1268 = vmatpush1.bf16.xpose.msra.mxu0 0
    %1269 = vmatprep.subr.bf16.mxu0 0
    %1270 = vmatpush1.bf16.xpose.msra.mxu0 0
    %1271 = vmatprep.subr.bf16.mxu0 0
    %1272 = vmatpush1.bf16.xpose.msra.mxu0 0
    %1273 = vmatprep.subr.bf16.mxu0 0
    %1274 = vmatpush1.bf16.xpose.msra.mxu0 0
    %1275 = vmatprep.subr.bf16.mxu0 0
    %1276 = vmatpush1.bf16.xpose.msra.mxu0 0
    %1277 = vmatprep.subr.bf16.mxu0 0
    %1278 = vmatpush1.bf16.xpose.msra.mxu0 0
    %1279 = vmatprep.subr.bf16.mxu0 0
    %1280 = vmatpush1.bf16.xpose.msra.mxu0 0
    %1281 = vmatprep.subr.bf16.mxu0 0
    %1282 = vmatpush1.bf16.xpose.msra.mxu0 0
    %1283 = vmatprep.subr.bf16.mxu0 0
    %1284 = vmatpush1.bf16.xpose.msra.mxu0 0
    %1285 = vmatprep.subr.bf16.mxu0 0
    %1286 = vmatpush1.bf16.xpose.msra.mxu0 0
    %1287 = vmatprep.subr.bf16.mxu0 0
    %1288 = vmatpush1.bf16.xpose.msra.mxu0 0
    %1289 = vmatprep.mubr.bf16.mxu0 0
    %1290 = vmatmul.mubr.bf16.gmra.mrb[0].mxu0 %v1252
    %v1291 = vpop.f32.mrb[0].mxu0
    %v1292 = vadd.f32 0.0, %v1291
    %v1293 = vpop.f32.mrb[0].mxu0
    %v1294 = vpop.f32.mrb[0].mxu0
    %v1295 = vpop.f32.mrb[0].mxu0
    %1296 = vdwg.mxu0
    %v1297 = vsel %vm434, %v1292, -inf
    %1298 = vmax.xlane.f32.xlu0 %v1297
    %v1299 = vpop.xlane.xlu0 %1298
    %v1300 = vsub.f32 %v1292, %v1299
    %v1301 = vmul.f32 %v1300, 1.442695
    %v1302 = vpow.pop %v1301
    %v1303 = vsel %vm434, %v1302, 0.0
    %1304 = vadd.xlane.f32.xlu0 %v1303
    %v1305 = vpop.xlane.xlu0 %1304
    %v1306 = vrcp.pop %v1305
    %v1307 = vmul.f32 %v1302, %v1306
    %v1308 = vpack.c.bf16 %v1307, %v1307
    %1309 = vrot.lane.b32.xlu0 %v1090, 64
    %v1310 = vpop.permute.xlu0 %1309
    %v1312 = vsel %vm434, %v1308, 0
    %v1315 = vsel %vm450, %v1310, 0
    %1317 = vmatprep.subr.bf16.mxu0 0
    %1318 = vmatpush1.bf16.msra.mxu0 %v1315
    %1319 = vmatprep.subr.bf16.mxu0 0
    %1320 = vmatpush1.bf16.msra.mxu0 0
    %1321 = vmatprep.subr.bf16.mxu0 0
    %1322 = vmatpush1.bf16.msra.mxu0 0
    %1323 = vmatprep.subr.bf16.mxu0 0
    %1324 = vmatpush1.bf16.msra.mxu0 0
    %1325 = vmatprep.subr.bf16.mxu0 0
    %1326 = vmatpush1.bf16.msra.mxu0 0
    %1327 = vmatprep.subr.bf16.mxu0 0
    %1328 = vmatpush1.bf16.msra.mxu0 0
    %1329 = vmatprep.subr.bf16.mxu0 0
    %1330 = vmatpush1.bf16.msra.mxu0 0
    %1331 = vmatprep.subr.bf16.mxu0 0
    %1332 = vmatpush1.bf16.msra.mxu0 0
    %1333 = vmatprep.subr.bf16.mxu0 0
    %1334 = vmatpush1.bf16.msra.mxu0 0
    %1335 = vmatprep.subr.bf16.mxu0 0
    %1336 = vmatpush1.bf16.msra.mxu0 0
    %1337 = vmatprep.subr.bf16.mxu0 0
    %1338 = vmatpush1.bf16.msra.mxu0 0
    %1339 = vmatprep.subr.bf16.mxu0 0
    %1340 = vmatpush1.bf16.msra.mxu0 0
    %1341 = vmatprep.subr.bf16.mxu0 0
    %1342 = vmatpush1.bf16.msra.mxu0 0
    %1343 = vmatprep.subr.bf16.mxu0 0
    %1344 = vmatpush1.bf16.msra.mxu0 0
    %1345 = vmatprep.subr.bf16.mxu0 0
    %1346 = vmatpush1.bf16.msra.mxu0 0
    %1347 = vmatprep.subr.bf16.mxu0 0
    %1348 = vmatpush1.bf16.msra.mxu0 0
    %1349 = vmatprep.mubr.bf16.mxu0 0
    %1350 = vmatmul.mubr.bf16.gmra.mrb[0].mxu0 %v1312
    %v1351 = vpop.f32.mrb[0].mxu0
    %v1352 = vadd.f32 0.0, %v1351
    %v1353 = vpop.f32.mrb[0].mxu0
    %v1354 = vpop.f32.mrb[0].mxu0
    %v1355 = vpop.f32.mrb[0].mxu0
    %1356 = vdwg.mxu0
    %1357 = vrot.lane.b32.xlu0 %v1028, 32
    %v1358 = vpop.permute.xlu0 %1357
    %1359 = vrot.lane.b32.xlu0 %v1030, 32
    %v1360 = vpop.permute.xlu0 %1359
    %v1362 = vsel %vm387, %v1358, 0
    %v1365 = vsel %vm387, %v1360, 0
    %1367 = vmatprep.subr.bf16.mxu0 0
    %1368 = vmatpush1.bf16.xpose.msra.mxu0 %v1365
    %1369 = vmatprep.subr.bf16.mxu0 0
    %1370 = vmatpush1.bf16.xpose.msra.mxu0 0
    %1371 = vmatprep.subr.bf16.mxu0 0
    %1372 = vmatpush1.bf16.xpose.msra.mxu0 0
    %1373 = vmatprep.subr.bf16.mxu0 0
    %1374 = vmatpush1.bf16.xpose.msra.mxu0 0
    %1375 = vmatprep.subr.bf16.mxu0 0
    %1376 = vmatpush1.bf16.xpose.msra.mxu0 0
    %1377 = vmatprep.subr.bf16.mxu0 0
    %1378 = vmatpush1.bf16.xpose.msra.mxu0 0
    %1379 = vmatprep.subr.bf16.mxu0 0
    %1380 = vmatpush1.bf16.xpose.msra.mxu0 0
    %1381 = vmatprep.subr.bf16.mxu0 0
    %1382 = vmatpush1.bf16.xpose.msra.mxu0 0
    %1383 = vmatprep.subr.bf16.mxu0 0
    %1384 = vmatpush1.bf16.xpose.msra.mxu0 0
    %1385 = vmatprep.subr.bf16.mxu0 0
    %1386 = vmatpush1.bf16.xpose.msra.mxu0 0
    %1387 = vmatprep.subr.bf16.mxu0 0
    %1388 = vmatpush1.bf16.xpose.msra.mxu0 0
    %1389 = vmatprep.subr.bf16.mxu0 0
    %1390 = vmatpush1.bf16.xpose.msra.mxu0 0
    %1391 = vmatprep.subr.bf16.mxu0 0
    %1392 = vmatpush1.bf16.xpose.msra.mxu0 0
    %1393 = vmatprep.subr.bf16.mxu0 0
    %1394 = vmatpush1.bf16.xpose.msra.mxu0 0
    %1395 = vmatprep.subr.bf16.mxu0 0
    %1396 = vmatpush1.bf16.xpose.msra.mxu0 0
    %1397 = vmatprep.subr.bf16.mxu0 0
    %1398 = vmatpush1.bf16.xpose.msra.mxu0 0
    %1399 = vmatprep.mubr.bf16.mxu0 0
    %1400 = vmatmul.mubr.bf16.gmra.mrb[0].mxu0 %v1362
    %v1401 = vpop.f32.mrb[0].mxu0
    %v1402 = vadd.f32 0.0, %v1401
    %v1403 = vpop.f32.mrb[0].mxu0
    %v1404 = vpop.f32.mrb[0].mxu0
    %v1405 = vpop.f32.mrb[0].mxu0
    %1406 = vdwg.mxu0
    %v1407 = vsel %vm434, %v1402, -inf
    %1408 = vmax.xlane.f32.xlu0 %v1407
    %v1409 = vpop.xlane.xlu0 %1408
    %v1410 = vsub.f32 %v1402, %v1409
    %v1411 = vmul.f32 %v1410, 1.442695
    %v1412 = vpow.pop %v1411
    %v1413 = vsel %vm434, %v1412, 0.0
    %1414 = vadd.xlane.f32.xlu0 %v1413
    %v1415 = vpop.xlane.xlu0 %1414
    %v1416 = vrcp.pop %v1415
    %v1417 = vmul.f32 %v1412, %v1416
    %v1418 = vpack.c.bf16 %v1417, %v1417
    %1419 = vrot.lane.b32.xlu0 %v1090, 32
    %v1420 = vpop.permute.xlu0 %1419
    %v1422 = vsel %vm434, %v1418, 0
    %v1425 = vsel %vm450, %v1420, 0
    %1427 = vmatprep.subr.bf16.mxu0 0
    %1428 = vmatpush1.bf16.msra.mxu0 %v1425
    %1429 = vmatprep.subr.bf16.mxu0 0
    %1430 = vmatpush1.bf16.msra.mxu0 0
    %1431 = vmatprep.subr.bf16.mxu0 0
    %1432 = vmatpush1.bf16.msra.mxu0 0
    %1433 = vmatprep.subr.bf16.mxu0 0
    %1434 = vmatpush1.bf16.msra.mxu0 0
    %1435 = vmatprep.subr.bf16.mxu0 0
    %1436 = vmatpush1.bf16.msra.mxu0 0
    %1437 = vmatprep.subr.bf16.mxu0 0
    %1438 = vmatpush1.bf16.msra.mxu0 0
    %1439 = vmatprep.subr.bf16.mxu0 0
    %1440 = vmatpush1.bf16.msra.mxu0 0
    %1441 = vmatprep.subr.bf16.mxu0 0
    %1442 = vmatpush1.bf16.msra.mxu0 0
    %1443 = vmatprep.subr.bf16.mxu0 0
    %1444 = vmatpush1.bf16.msra.mxu0 0
    %1445 = vmatprep.subr.bf16.mxu0 0
    %1446 = vmatpush1.bf16.msra.mxu0 0
    %1447 = vmatprep.subr.bf16.mxu0 0
    %1448 = vmatpush1.bf16.msra.mxu0 0
    %1449 = vmatprep.subr.bf16.mxu0 0
    %1450 = vmatpush1.bf16.msra.mxu0 0
    %1451 = vmatprep.subr.bf16.mxu0 0
    %1452 = vmatpush1.bf16.msra.mxu0 0
    %1453 = vmatprep.subr.bf16.mxu0 0
    %1454 = vmatpush1.bf16.msra.mxu0 0
    %1455 = vmatprep.subr.bf16.mxu0 0
    %1456 = vmatpush1.bf16.msra.mxu0 0
    %1457 = vmatprep.subr.bf16.mxu0 0
    %1458 = vmatpush1.bf16.msra.mxu0 0
    %1459 = vmatprep.mubr.bf16.mxu0 0
    %1460 = vmatmul.mubr.bf16.gmra.mrb[0].mxu0 %v1422
    %v1461 = vpop.f32.mrb[0].mxu0
    %v1462 = vadd.f32 0.0, %v1461
    %v1463 = vpop.f32.mrb[0].mxu0
    %v1464 = vpop.f32.mrb[0].mxu0
    %v1465 = vpop.f32.mrb[0].mxu0
    %1466 = vdwg.mxu0
    %1468 = vrot.lane.b32.xlu0 %v1242, 32
    %v1469 = vpop.permute.xlu0 %1468
    %1472 = vrot.lane.b32.xlu0 %v1352, 64
    %v1473 = vpop.permute.xlu0 %1472
    %1476 = vrot.lane.b32.xlu0 %v1462, 96
    %v1477 = vpop.permute.xlu0 %1476
    %v1479 = vsel %vm387, %v1132, %v1469
    %v1480 = vsel %vm840, %v1479, %v1473
    %v1481 = vsel %vm842, %v1480, %v1477
    %v1482 = vpack.c.bf16 %v1481, %v1481
    %v1483 = vld [vmem:[#allocation10 + $0xc] sm:$0xf]
    %v1484 = vld [vmem:[#allocation10 + $0x1c] sm:$0xf]
    %v1485 = vld [vmem:[#allocation10 + $0x2c] sm:$0xf]
    %v1486 = vld [vmem:[#allocation10 + $0x3c] sm:$0xf]
    %v1487 = vld [vmem:[#allocation10 + $0x4c] sm:$0xf]
    %v1488 = vld [vmem:[#allocation10 + $0x5c] sm:$0xf]
    %v1489 = vld [vmem:[#allocation10 + $0x6c] sm:$0xf]
    %v1490 = vld [vmem:[#allocation10 + $0x7c] sm:$0xf]
    %v1491 = vld [vmem:[#allocation10 + $0x8c] sm:$0xf]
    %v1492 = vld [vmem:[#allocation10 + $0x9c] sm:$0xf]
    %v1493 = vld [vmem:[#allocation10 + $0xac] sm:$0xf]
    %v1494 = vld [vmem:[#allocation10 + $0xbc] sm:$0xf]
    %v1495 = vld [vmem:[#allocation10 + $0xcc] sm:$0xf]
    %v1496 = vld [vmem:[#allocation10 + $0xdc] sm:$0xf]
    %v1497 = vld [vmem:[#allocation10 + $0xec] sm:$0xf]
    %v1498 = vld [vmem:[#allocation10 + $0xfc] sm:$0xf]
    %v1499 = vld [vmem:[%s3 + $0x3] sm:$0x1]
    %v1501 = vlaneseq
    %v1502 = vshrl.u32 %v1501, 7
    %v1503 = vsub.s32 0, %v1502
    %v1504 = vrot.slane %v1499, %v1503
    %v1522 = vunpack.c.l.b16 %v1483
    %v1523 = vunpack.c.l.b16 %v1484
    %v1524 = vunpack.c.l.b16 %v1485
    %v1525 = vunpack.c.l.b16 %v1486
    %v1526 = vunpack.c.l.b16 %v1487
    %v1527 = vunpack.c.l.b16 %v1488
    %v1528 = vunpack.c.l.b16 %v1489
    %v1529 = vunpack.c.l.b16 %v1490
    %v1530 = vunpack.c.l.b16 %v1491
    %v1531 = vunpack.c.l.b16 %v1492
    %v1532 = vunpack.c.l.b16 %v1493
    %v1533 = vunpack.c.l.b16 %v1494
    %v1534 = vunpack.c.l.b16 %v1495
    %v1535 = vunpack.c.l.b16 %v1496
    %v1536 = vunpack.c.l.b16 %v1497
    %v1537 = vunpack.c.l.b16 %v1498
    %v1538 = vpack.c.b16 %v1523, %v1522
    %v1539 = vpack.c.b16 %v1525, %v1524
    %v1540 = vpack.c.b16 %v1527, %v1526
    %v1541 = vpack.c.b16 %v1529, %v1528
    %v1542 = vpack.c.b16 %v1531, %v1530
    %v1543 = vpack.c.b16 %v1533, %v1532
    %v1544 = vpack.c.b16 %v1535, %v1534
    %v1545 = vpack.c.b16 %v1537, %v1536
    %1554 = vmatprep.subr.bf16.mxu0 0
    %1555 = vmatpush1.bf16.msra.mxu0 %v1538
    %1556 = vmatprep.subr.bf16.mxu0 0
    %1557 = vmatpush1.bf16.msra.mxu0 %v1539
    %1558 = vmatprep.subr.bf16.mxu0 0
    %1559 = vmatpush1.bf16.msra.mxu0 %v1540
    %1560 = vmatprep.subr.bf16.mxu0 0
    %1561 = vmatpush1.bf16.msra.mxu0 %v1541
    %1562 = vmatprep.subr.bf16.mxu0 0
    %1563 = vmatpush1.bf16.msra.mxu0 %v1542
    %1564 = vmatprep.subr.bf16.mxu0 0
    %1565 = vmatpush1.bf16.msra.mxu0 %v1543
    %1566 = vmatprep.subr.bf16.mxu0 0
    %1567 = vmatpush1.bf16.msra.mxu0 %v1544
    %1568 = vmatprep.subr.bf16.mxu0 0
    %1569 = vmatpush1.bf16.msra.mxu0 %v1545
    %1570 = vmatprep.subr.bf16.mxu0 0
    %1571 = vmatpush1.bf16.msra.mxu0 0
    %1572 = vmatprep.subr.bf16.mxu0 0
    %1573 = vmatpush1.bf16.msra.mxu0 0
    %1574 = vmatprep.subr.bf16.mxu0 0
    %1575 = vmatpush1.bf16.msra.mxu0 0
    %1576 = vmatprep.subr.bf16.mxu0 0
    %1577 = vmatpush1.bf16.msra.mxu0 0
    %1578 = vmatprep.subr.bf16.mxu0 0
    %1579 = vmatpush1.bf16.msra.mxu0 0
    %1580 = vmatprep.subr.bf16.mxu0 0
    %1581 = vmatpush1.bf16.msra.mxu0 0
    %1582 = vmatprep.subr.bf16.mxu0 0
    %1583 = vmatpush1.bf16.msra.mxu0 0
    %1584 = vmatprep.subr.bf16.mxu0 0
    %1585 = vmatpush1.bf16.msra.mxu0 0
    %1586 = vmatprep.mubr.bf16.mxu0 0
    %1587 = vmatmul.mubr.bf16.gmra.mrb[0].mxu0 %v1482
    %v1588 = vpop.f32.mrb[0].mxu0
    %v1589 = vadd.f32 %v1504, %v1588
    %v1590 = vpop.f32.mrb[0].mxu0
    %v1591 = vpop.f32.mrb[0].mxu0
    %v1592 = vpop.f32.mrb[0].mxu0
    %1593 = vdwg.mxu0
    %v1594 = vld [vmem:[#allocation4 + $0x8] sm:$0xff]
    %v1595 = vadd.f32 %v1589, %v1594
    %v1597 = vcombine.high %v1595, %v1595
    %v1599 = vunpack.c.l.s4 1966171168
    %v1600 = vunpack.c.0.s8 %v1599
    %v1601 = vlaneseq
    %v1602 = vshrl.u32 %v1601, 7
    %v1603 = vsub.s32 %v1600, %v1602
    %v1604 = vrot.slane %v1595, %v1603
    %v1606 = vunpack.c.l.s4 1966171168
    %v1607 = vunpack.c.0.s8 %v1606
    %v1608 = vlaneseq
    %v1609 = vshrl.u32 %v1608, 7
    %v1610 = vsub.s32 %v1607, %v1609
    %v1611 = vrot.slane %v1597, %v1610
    %v1612 = vcombine.high %v1604, %v1604
    %v1613 = vcombine.high %v1611, %v1611
    %v1615 = vunpack.c.l.s4 1966171168
    %v1616 = vunpack.c.0.s8 %v1615
    %v1617 = vlaneseq
    %v1618 = vshrl.u32 %v1617, 7
    %v1619 = vsub.s32 %v1616, %v1618
    %v1620 = vrot.slane %v1604, %v1619
    %v1622 = vunpack.c.l.s4 1966171168
    %v1623 = vunpack.c.0.s8 %v1622
    %v1624 = vlaneseq
    %v1625 = vshrl.u32 %v1624, 7
    %v1626 = vsub.s32 %v1623, %v1625
    %v1627 = vrot.slane %v1611, %v1626
    %v1629 = vunpack.c.l.s4 1966171168
    %v1630 = vunpack.c.0.s8 %v1629
    %v1631 = vlaneseq
    %v1632 = vshrl.u32 %v1631, 7
    %v1633 = vsub.s32 %v1630, %v1632
    %v1634 = vrot.slane %v1612, %v1633
    %v1636 = vunpack.c.l.s4 1966171168
    %v1637 = vunpack.c.0.s8 %v1636
    %v1638 = vlaneseq
    %v1639 = vshrl.u32 %v1638, 7
    %v1640 = vsub.s32 %v1637, %v1639
    %v1641 = vrot.slane %v1613, %v1640
    %v1642 = vcombine.high %v1620, %v1620
    %v1643 = vcombine.high %v1627, %v1627
    %v1644 = vcombine.high %v1634, %v1634
    %v1645 = vcombine.high %v1641, %v1641
    %1654 = vst [vmem:[#allocation11 + $0x1] sm:$0x1] %v1620
    %1655 = vst [vmem:[#allocation11 + $0x3] sm:$0x1] %v1634
    %1656 = vst [vmem:[#allocation11 + $0x5] sm:$0x1] %v1642
    %1657 = vst [vmem:[#allocation11 + $0x7] sm:$0x1] %v1644
    %1658 = vst [vmem:[#allocation11 + $0x9] sm:$0x1] %v1627
    %1659 = vst [vmem:[#allocation11 + $0xb] sm:$0x1] %v1641
    %1660 = vst [vmem:[#allocation11 + $0xd] sm:$0x1] %v1643
    %1661 = vst [vmem:[#allocation11 + $0xf] sm:$0x1] %v1645
    // Predicated region
    $region30: #{tpu_custom_call.1} parent=1 // pred_check
      _
    $region31: #{tpu_custom_call.1} parent=1 // pred_check_branch
      %1663 = sbr.rel (0) target = $region33
    $region32: #{tpu_custom_call.1} parent=1 // pred_region
      %s1665 = ssub.s32 256, 256
      %1666 = vsyncadd [#allocation7], %s1665
      %s1667 = sshll.u32 [#allocation11], 4
      %s1668 = int_to_ptr.vmem [resolvable:$true] %s1667
      %1673 = dma.vmem_to_hbm [thread:$0]  %s1668, 256, %s4, [#allocation7], 32, 32, 2
    $region33: #{tpu_custom_call.1} parent=1 // pred_fallthru
      _
    // Predicated region
    $region34: #{tpu_custom_call.1} parent=1 // pred_check
      _
    $region35: #{tpu_custom_call.1} parent=1 // pred_check_branch
      %1675 = sbr.rel (0) target = $region37
    $region36: #{tpu_custom_call.1} parent=1 // pred_region
      %1676 = dma.done [#allocation7], 256
    $region37: #{tpu_custom_call.1} parent=1 // pred_fallthru
      _
    %1677 = vsyncpa [#allocation6], 1
    %1678 = vsyncpa [#allocation9], 1
    %1679 = vsyncpa [#allocation7], 1

</llo_original>
